<compile_context>
chip_gen: v5e
topology: v5e:2x2
jax: 0.10.0
libtpu: 0.0.40
codegen_flags: <defaults>
</compile_context>

<pallas_src>
import functools
import math

import jax
import jax.numpy as jnp
from jax import lax
from jax.experimental import pallas as pl
from jax.experimental.pallas import tpu as pltpu

_LANE = 128
_SUBLANE = 8


def _round_up(x, m):
    return ((x + m - 1) // m) * m


def _largest_divisor_leq(n, cap):
    for d in range(min(n, cap), 0, -1):
        if n % d == 0:
            return d
    return 1


def _pick_row_tile(n, cap=1024):
    """Row tile: divides n, sublane friendly, preferring MXU-aligned sizes."""
    if n <= cap:
        return n
    for align in (256, 128, _SUBLANE):
        start = cap - (cap % align)
        for d in range(start, align - 1, -align):
            if d > 0 and n % d == 0:
                return d
    return n


def _pick_col_tile(n, cap=512):
    """Lane tile: n is a multiple of 128; prefer multiples of 256 (v6e/v7x MXU)."""
    if n <= cap:
        return n
    for align in (256, 128):
        start = cap - (cap % align)
        for d in range(start, align - 1, -align):
            if d > 0 and n % d == 0:
                return d
    return n


def _device_kind():
    try:
        return jax.devices()[0].device_kind.lower()
    except Exception:
        return ""


def _is_v7x(kind=None):
    kind = _device_kind() if kind is None else kind
    return ("v7" in kind) or ("7x" in kind)


def _physical_vmem_bytes():
    kind = _device_kind()
    if _is_v7x(kind):
        return 64 * 1024 * 1024
    if ("v5" in kind) or ("v6" in kind):
        return 128 * 1024 * 1024
    return 64 * 1024 * 1024          # unknown chip: conservative


def _vmem_limit(bytes_est):
    # Generation-aware scoped-VMEM cap: ~96 MiB on v5e/v6e, ~48 MiB on v7x.
    cap = int(0.75 * _physical_vmem_bytes())
    return int(min(max(4 * bytes_est, 8 * 1024 * 1024), cap))


def _sigmoid(x):
    # Single-EUP sigmoid (one tanh push) instead of exp + reciprocal.
    return 0.5 * jnp.tanh(0.5 * x) + 0.5


# ----------------------------------------------------------------------------
# Kernel 0: XB table = emb_pad @ b_pad   (hoists x@b out of the recurrence)
# ----------------------------------------------------------------------------
def _xb_table_kernel(emb_ref, b_ref, out_ref):
    out_ref[...] = jnp.dot(emb_ref[...], b_ref[...],
                           preferred_element_type=jnp.float32)


# ----------------------------------------------------------------------------
# Kernel 1: the serial CP-LSTM recurrence (time-chunked, batch-tiled).
# ----------------------------------------------------------------------------
def _cp_lstm_recurrent_kernel(xb_ref, h0_ref, c0_ref, a_ref, ctbd_ref,
                              hs_ref, h_last_ref, c_last_ref,
                              *, chunk, hidden_pad, unroll):
    # grid = (batch_tiles ["parallel"], time_chunks ["arbitrary"])
    # GUARD: time MUST stay the innermost, "arbitrary" grid axis — h_last and
    # c_last (constant index_map over time) double as the resident recurrent
    # state; reordering/parallelizing that axis silently breaks the recurrence.
    @pl.when(pl.program_id(1) == 0)
    def _():
        h_last_ref[...] = h0_ref[...]
        c_last_ref[...] = c0_ref[...]

    a = a_ref[...]          # (Hp, R4p)   compute dtype (bf16 by default)
    ctbd = ctbd_ref[...]    # (R4p, 4*Hp) f32 block-diagonal ct
    hp = hidden_pad

    def step(s, carry):
        h, c = carry                       # f32 (Bt, Hp); padded cols stay 0
        xb_t = xb_ref[s]                   # (Bt, R4p) f32, precomputed x_t @ b
        ha = jnp.dot(h.astype(a.dtype), a, preferred_element_type=jnp.float32)
        gates = ha * xb_t                  # f32 (no bf16 double-rounding)
        # Single fused contraction for all four gates (block-diagonal ct).
        # TODO(synk): for very large rank (4R >= ~512) restructure as four
        # (Bt, Rp) @ (Rp, Hp) contractions to avoid the structural-zero K-work.
        pre = jnp.dot(gates, ctbd, preferred_element_type=jnp.float32)
        f_t = _sigmoid(pre[:, 0 * hp:1 * hp])
        i_t = _sigmoid(pre[:, 1 * hp:2 * hp])
        g_t = jnp.tanh(pre[:, 2 * hp:3 * hp])
        o_t = _sigmoid(pre[:, 3 * hp:4 * hp])
        c_new = f_t * c + i_t * g_t
        h_new = o_t * jnp.tanh(c_new)
        hs_ref[s] = h_new.astype(hs_ref.dtype)        # lane-dense per-step h
        return h_new, c_new

    h_f, c_f = lax.fori_loop(0, chunk, step,
                             (h_last_ref[...], c_last_ref[...]),
                             unroll=unroll)
    h_last_ref[...] = h_f
    c_last_ref[...] = c_f


# ----------------------------------------------------------------------------
# Kernel 2: the (hoisted) decoder:  logits = hs @ Wd + bd
# ----------------------------------------------------------------------------
def _decoder_kernel(hs_ref, wd_ref, bd_ref, out_ref):
    acc = jnp.dot(hs_ref[...], wd_ref[...], preferred_element_type=jnp.float32)
    out_ref[...] = (acc + bd_ref[...]).astype(out_ref.dtype)


# ----------------------------------------------------------------------------
# Wrapper
# ----------------------------------------------------------------------------
def cp_lstm_forward(inp, params, init_states=None, *, hidden_size, rank,
                    use_bf16=True, time_chunk=32, logits_dtype=jnp.float32):
    """inp: (seq, batch) int32 token ids.  Returns (logits, (c_T, h_T)).

    Set logits_dtype=jnp.bfloat16 to halve the decoder HBM writeback.
    """
    cdt = jnp.bfloat16 if use_bf16 else jnp.float32
    csize = jnp.dtype(cdt).itemsize

    T, B = inp.shape
    emb = params["emb"]
    V_in, I = emb.shape
    H = hidden_size
    V = params["wd"].shape[1]
    R = rank

    # ---- lane padding (multiples of 128) ----
    Hp = _round_up(H, _LANE)
    Ip = _round_up(I, _LANE)
    Vp = _round_up(V, _LANE)
    R4p = _round_up(4 * R, _LANE)
    Vr = _round_up(V_in, _SUBLANE)

    # ---- tiling choices ----
    Tc = _largest_divisor_leq(T, time_chunk)          # timesteps per grid step
    # Split the batch across TensorCores ONLY on megacore (v7x) chips; on
    # single-TC v5e/v6e splitting just doubles the serial recurrence length.
    if _is_v7x() and B % 32 == 0 and B >= 128:
        Bt = B // 2
    else:
        Bt = B
    n_bt, n_tc = B // Bt, T // Tc

    # ---- pad / repack weights (zeros in padded lanes keep results exact) ----
    a_p = jnp.zeros((Hp, R4p), cdt).at[:H, :4 * R].set(params["a"].astype(cdt))
    b_p = jnp.zeros((Ip, R4p), cdt).at[:I, :4 * R].set(params["b"].astype(cdt))
    emb_p = jnp.zeros((Vr, Ip), cdt).at[:V_in, :I].set(emb.astype(cdt))
    ct = params["ct"].astype(jnp.float32)
    ct_bd = jnp.zeros((R4p, 4 * Hp), jnp.float32)
    for k in range(4):  # block-diagonal ct: gate k -> cols [k*Hp, k*Hp + H)
        ct_bd = ct_bd.at[k * R:(k + 1) * R, k * Hp:k * Hp + H].set(
            ct[k * R:(k + 1) * R, :])
    wd_p = jnp.zeros((Hp, Vp), cdt).at[:H, :V].set(params["wd"].astype(cdt))
    bd_p = jnp.zeros((1, Vp), jnp.float32).at[:, :V].set(
        params["bd"].astype(jnp.float32).reshape(1, V))

    if init_states is None:
        h0 = jnp.zeros((B, H), jnp.float32)
        c0 = jnp.zeros((B, H), jnp.float32)
    else:
        h0, c0 = init_states
        h0 = h0.astype(jnp.float32)
        c0 = c0.astype(jnp.float32)
    h0_p = jnp.zeros((B, Hp), jnp.float32).at[:, :H].set(h0)
    c0_p = jnp.zeros((B, Hp), jnp.float32).at[:, :H].set(c0)

    # -------------------- kernel 0: XB table (emb @ b) --------------------
    TVr = _pick_row_tile(Vr, cap=512)
    tbl_vmem = 2 * (TVr * Ip + Ip * R4p) * csize + 2 * TVr * R4p * 4
    xb_table = pl.pallas_call(
        _xb_table_kernel,
        out_shape=jax.ShapeDtypeStruct((Vr, R4p), jnp.float32),
        grid_spec=pltpu.PrefetchScalarGridSpec(
            num_scalar_prefetch=0,
            grid=(Vr // TVr,),
            in_specs=[pl.BlockSpec((TVr, Ip), lambda i: (i, 0)),
                      pl.BlockSpec((Ip, R4p), lambda i: (0, 0))],
            out_specs=pl.BlockSpec((TVr, R4p), lambda i: (i, 0))),
        compiler_params=pltpu.CompilerParams(
            dimension_semantics=("parallel",),
            vmem_limit_bytes=_vmem_limit(tbl_vmem)),
        cost_estimate=pl.CostEstimate(
            flops=2 * Vr * Ip * R4p, transcendentals=0,
            bytes_accessed=(Vr * Ip + Ip * R4p) * csize + Vr * R4p * 4),
    )(emb_p, b_p)

    # Per-token gather (JAX glue): xb[t, b] = (emb @ b)[inp[t, b]]
    xb = jnp.take(xb_table, inp, axis=0)               # (T, B, R4p) f32

    # -------------------- kernel 1: recurrence --------------------
    rec_vmem = (2 * Tc * Bt * R4p * 4                  # xb chunk (f32)
                + 2 * Tc * Bt * Hp * csize             # hs chunk
                + 2 * Hp * R4p * csize                 # a
                + 2 * R4p * 4 * Hp * 4                 # ct_bd (f32)
                + 4 * 2 * Bt * Hp * 4)                 # h/c state + init
    rec_flops = T * B * (2 * Hp * R4p + 2 * R4p * 4 * Hp + 12 * Hp)
    rec_bytes = (T * B * R4p * 4 + T * B * Hp * csize
                 + n_bt * (Hp * R4p * csize + R4p * 4 * Hp * 4)
                 + 4 * B * Hp * 4)
    rec_kernel = functools.partial(_cp_lstm_recurrent_kernel,
                                   chunk=Tc, hidden_pad=Hp,
                                   unroll=min(Tc, 8))
    rec_grid = pltpu.PrefetchScalarGridSpec(
        num_scalar_prefetch=0,
        grid=(n_bt, n_tc),
        in_specs=[
            pl.BlockSpec((Tc, Bt, R4p), lambda bi, ti: (ti, bi, 0)),  # xb chunk
            pl.BlockSpec((Bt, Hp), lambda bi, ti: (bi, 0)),           # h0
            pl.BlockSpec((Bt, Hp), lambda bi, ti: (bi, 0)),           # c0
            pl.BlockSpec((Hp, R4p), lambda bi, ti: (0, 0)),           # a
            pl.BlockSpec((R4p, 4 * Hp), lambda bi, ti: (0, 0)),       # ct (blockdiag)
        ],
        out_specs=[
            pl.BlockSpec((Tc, Bt, Hp), lambda bi, ti: (ti, bi, 0)),   # hs per step
            pl.BlockSpec((Bt, Hp), lambda bi, ti: (bi, 0)),           # final h (state)
            pl.BlockSpec((Bt, Hp), lambda bi, ti: (bi, 0)),           # final c (state)
        ],
    )
    hs, h_last, c_last = pl.pallas_call(
        rec_kernel,
        out_shape=(
            jax.ShapeDtypeStruct((T, B, Hp), cdt),
            jax.ShapeDtypeStruct((B, Hp), jnp.float32),
            jax.ShapeDtypeStruct((B, Hp), jnp.float32),
        ),
        grid_spec=rec_grid,
        compiler_params=pltpu.CompilerParams(
            dimension_semantics=("parallel", "arbitrary"),
            vmem_limit_bytes=_vmem_limit(rec_vmem)),
        cost_estimate=pl.CostEstimate(
            flops=rec_flops, transcendentals=T * B * Hp * 5,
            bytes_accessed=rec_bytes),
    )(xb, h0_p, c0_p, a_p, ct_bd)

    # -------------------- kernel 2: decoder (hoisted) --------------------
    TB = T * B
    hs_2d = hs.reshape(TB, Hp)
    TM = _pick_row_tile(TB, cap=1024)
    TV = _pick_col_tile(Vp, cap=512)
    nr, nc = TB // TM, Vp // TV
    # Pick the grid-axis order so the operand whose re-streaming would cost
    # more HBM traffic is the one held resident across the inner axis.
    traffic_row_outer = TB * Hp + nr * Hp * Vp   # hs once, wd re-read nr times
    traffic_col_outer = nc * TB * Hp + Hp * Vp   # wd once, hs re-read nc times
    if traffic_row_outer <= traffic_col_outer:
        dec_grid_dims = (nr, nc)
        hs_spec = pl.BlockSpec((TM, Hp), lambda i, j: (i, 0))
        wd_spec = pl.BlockSpec((Hp, TV), lambda i, j: (0, j))
        bd_spec = pl.BlockSpec((1, TV), lambda i, j: (0, j))
        out_spec = pl.BlockSpec((TM, TV), lambda i, j: (i, j))
        dec_read = traffic_row_outer
    else:
        dec_grid_dims = (nc, nr)
        hs_spec = pl.BlockSpec((TM, Hp), lambda j, i: (i, 0))
        wd_spec = pl.BlockSpec((Hp, TV), lambda j, i: (0, j))
        bd_spec = pl.BlockSpec((1, TV), lambda j, i: (0, j))
        out_spec = pl.BlockSpec((TM, TV), lambda j, i: (i, j))
        dec_read = traffic_col_outer
    out_isize = jnp.dtype(logits_dtype).itemsize
    dec_vmem = (2 * (TM * Hp + Hp * TV) * csize
                + 2 * TV * 4 + 2 * TM * TV * out_isize)
    dec_grid = pltpu.PrefetchScalarGridSpec(
        num_scalar_prefetch=0,
        grid=dec_grid_dims,
        in_specs=[hs_spec, wd_spec, bd_spec],
        out_specs=out_spec,
    )
    logits_p = pl.pallas_call(
        _decoder_kernel,
        out_shape=jax.ShapeDtypeStruct((TB, Vp), logits_dtype),
        grid_spec=dec_grid,
        compiler_params=pltpu.CompilerParams(
            dimension_semantics=("parallel", "parallel"),
            vmem_limit_bytes=_vmem_limit(dec_vmem)),
        cost_estimate=pl.CostEstimate(
            flops=2 * TB * Hp * Vp, transcendentals=0,
            bytes_accessed=dec_read * csize + Vp * 4 + TB * Vp * out_isize),
    )(hs_2d, wd_p, bd_p)

    logits = logits_p.reshape(T, B, Vp)[:, :, :V]
    h_T = h_last[:, :H]
    c_T = c_last[:, :H]
    return logits, (c_T, h_T)


# ----------------------------------------------------------------------------
# Pure-JAX reference mirroring the PyTorch forward (seq == batch regime).
# ----------------------------------------------------------------------------
def cp_lstm_reference(inp, params, init_states=None, *, hidden_size, rank):
    x = params["emb"][inp].astype(jnp.float32)   # (T, B, I)
    T, B, _ = x.shape
    H = hidden_size

    def step(carry, x_t):
        h, c = carry
        gates = (h @ params["a"]) * (x_t @ params["b"])           # (B, 4R)
        g4 = gates.reshape(B, 4, 1, rank)
        c4 = params["ct"].reshape(1, 4, rank, H)
        gg = jnp.matmul(g4, c4).squeeze(2)                        # (B, 4, H)
        f = jax.nn.sigmoid(gg[:, 0])
        i = jax.nn.sigmoid(gg[:, 1])
        g = jnp.tanh(gg[:, 2])
        o = jax.nn.sigmoid(gg[:, 3])
        c_new = f * c + i * g
        h_new = o * jnp.tanh(c_new)
        return (h_new, c_new), h_new

    if init_states is None:
        h0 = jnp.zeros((B, H), jnp.float32)
        c0 = jnp.zeros((B, H), jnp.float32)
    else:
        h0, c0 = init_states
    (h_T, c_T), hs = jax.lax.scan(step, (h0, c0), x)
    logits = hs @ params["wd"] + params["bd"]
    return logits, (c_T, h_T)


def init_params(key, *, input_size, hidden_size, vocab_size, rank):
    stdv = 1.0 / math.sqrt(hidden_size)
    ks = jax.random.split(key, 6)
    u = lambda k, shape: jax.random.uniform(k, shape, jnp.float32, -stdv, stdv)
    return {
        "emb": u(ks[0], (vocab_size, input_size)),
        "a":   u(ks[1], (hidden_size, 4 * rank)),
        "b":   u(ks[2], (input_size, 4 * rank)),
        "ct":  u(ks[3], (4 * rank, hidden_size)),
        "wd":  u(ks[4], (hidden_size, vocab_size)),   # decoder weight (H, V)
        "bd":  u(ks[5], (1, vocab_size)),             # decoder bias
        # TODO(synk): self.bias (hidden_size*4) exists in __init__ but is never
        # used in the PyTorch forward, so it is intentionally omitted here.
    }


if __name__ == "__main__":
    input_size, hidden_size, vocab_size, rank = 16, 32, 32, 8
    seq, batch = 8, 8   # original forward only type-checks when seq == batch

    key = jax.random.PRNGKey(0)
    pkey, ikey, hkey, ckey = jax.random.split(key, 4)
    params = init_params(pkey, input_size=input_size, hidden_size=hidden_size,
                         vocab_size=vocab_size, rank=rank)
    inp = jax.random.randint(ikey, (seq, batch), 0, vocab_size, dtype=jnp.int32)
    # Non-zero init states make the comparison numerically meaningful
    # (with zero states the CP gate product (h@a)*(x@b) is identically zero).
    h0 = 0.5 * jax.random.normal(hkey, (batch, hidden_size), jnp.float32)
    c0 = 0.5 * jax.random.normal(ckey, (batch, hidden_size), jnp.float32)

    fwd = jax.jit(functools.partial(cp_lstm_forward,
                                    hidden_size=hidden_size, rank=rank))
    logits, (c_T, h_T) = fwd(inp, params, (h0, c0))
    jax.block_until_ready((logits, c_T, h_T))

    ref_logits, (ref_c, ref_h) = cp_lstm_reference(
        inp, params, (h0, c0), hidden_size=hidden_size, rank=rank)

    # bf16 MXU inputs with f32 accumulation/state -> loosened tolerances.
    atol, rtol = 1e-2, 2e-2
    assert jnp.allclose(logits, ref_logits, atol=atol, rtol=rtol)
    assert jnp.allclose(c_T, ref_c, atol=atol, rtol=rtol)
    assert jnp.allclose(h_T, ref_h, atol=atol, rtol=rtol)

    print("KERNEL_OK")
</pallas_src>

<mosaic_0001>
module attributes {stable_mosaic.version = 11 : i64} {
  func.func @_xb_table_kernel(%arg0: i32, %arg1: memref<32x128xbf16, #tpu.memory_space<vmem>>, %arg2: memref<128x128xbf16, #tpu.memory_space<vmem>>, %arg3: memref<32x128xf32, #tpu.memory_space<vmem>>) attributes {dimension_semantics = [#tpu.dimension_semantics<parallel>], iteration_bounds = array<i64: 1>, scalar_prefetch = 0 : i64, scratch_operands = 0 : i64, tpu.core_type = #tpu.core_type<tc>, window_params = [{transform_indices = @transform_0, window_bounds = array<i64: 32, 128>}, {pipeline_mode = #tpu.pipeline_mode<synchronous>, transform_indices = @transform_1, window_bounds = array<i64: 128, 128>}, {transform_indices = @transform_2, window_bounds = array<i64: 32, 128>}]} {
    %c0 = arith.constant 0 : index
    %c0_0 = arith.constant 0 : index
    %0 = vector.load %arg1[%c0, %c0_0] : memref<32x128xbf16, #tpu.memory_space<vmem>>, vector<32x128xbf16>
    %c0_1 = arith.constant 0 : index
    %c0_2 = arith.constant 0 : index
    %1 = vector.load %arg2[%c0_1, %c0_2] : memref<128x128xbf16, #tpu.memory_space<vmem>>, vector<128x128xbf16>
    %cst = arith.constant dense<0.000000e+00> : vector<32x128xf32>
    %2 = tpu.matmul %0, %1, %cst {dimension_numbers = #tpu.dot_dimension_numbers<[1], [0], [0], [1], [0, 0, 1, 1], [], []>} : vector<32x128xbf16>, vector<128x128xbf16>, vector<32x128xf32> -> vector<32x128xf32>
    %c0_3 = arith.constant 0 : index
    %c0_4 = arith.constant 0 : index
    %3 = vector.load %arg3[%c0_3, %c0_4] : memref<32x128xf32, #tpu.memory_space<vmem>>, vector<32x128xf32>
    tpu.vector_store %arg3[%c0_3, %c0_4], %2 {strides = array<i32>} : memref<32x128xf32, #tpu.memory_space<vmem>>, vector<32x128xf32>,
    return
  }
  func.func @transform_0(%arg0: i32) -> (i32, i32) {
    %c0_i32 = arith.constant 0 : i32
    %c0_i32_0 = arith.constant 0 : i32
    return %arg0, %c0_i32 : i32, i32
  }
  func.func @transform_1(%arg0: i32) -> (i32, i32) {
    %c0_i32 = arith.constant 0 : i32
    %c0_i32_0 = arith.constant 0 : i32
    %c0_i32_1 = arith.constant 0 : i32
    return %c0_i32, %c0_i32_0 : i32, i32
  }
  func.func @transform_2(%arg0: i32) -> (i32, i32) {
    %c0_i32 = arith.constant 0 : i32
    %c0_i32_0 = arith.constant 0 : i32
    return %arg0, %c0_i32 : i32, i32
  }
}

module attributes {stable_mosaic.version = 11 : i64} {
  func.func @_decoder_kernel(%arg0: i32, %arg1: i32, %arg2: memref<64x128xbf16, #tpu.memory_space<vmem>>, %arg3: memref<128x128xbf16, #tpu.memory_space<vmem>>, %arg4: memref<1x128xf32, #tpu.memory_space<vmem>>, %arg5: memref<64x128xf32, #tpu.memory_space<vmem>>) attributes {dimension_semantics = [#tpu.dimension_semantics<parallel>, #tpu.dimension_semantics<parallel>], iteration_bounds = array<i64: 1, 1>, scalar_prefetch = 0 : i64, scratch_operands = 0 : i64, tpu.core_type = #tpu.core_type<tc>, window_params = [{transform_indices = @transform_0, window_bounds = array<i64: 64, 128>}, {transform_indices = @transform_1, window_bounds = array<i64: 128, 128>}, {transform_indices = @transform_2, window_bounds = array<i64: 1, 128>}, {transform_indices = @transform_3, window_bounds = array<i64: 64, 128>}]} {
    %c0 = arith.constant 0 : index
    %c0_0 = arith.constant 0 : index
    %0 = vector.load %arg2[%c0, %c0_0] : memref<64x128xbf16, #tpu.memory_space<vmem>>, vector<64x128xbf16>
    %c0_1 = arith.constant 0 : index
    %c0_2 = arith.constant 0 : index
    %1 = vector.load %arg3[%c0_1, %c0_2] : memref<128x128xbf16, #tpu.memory_space<vmem>>, vector<128x128xbf16>
    %cst = arith.constant dense<0.000000e+00> : vector<64x128xf32>
    %2 = tpu.matmul %0, %1, %cst {dimension_numbers = #tpu.dot_dimension_numbers<[1], [0], [0], [1], [0, 0, 1, 1], [], []>} : vector<64x128xbf16>, vector<128x128xbf16>, vector<64x128xf32> -> vector<64x128xf32>
    %c0_3 = arith.constant 0 : index
    %c0_4 = arith.constant 0 : index
    %3 = vector.load %arg4[%c0_3, %c0_4] : memref<1x128xf32, #tpu.memory_space<vmem>>, vector<1x128xf32>
    %4 = vector.broadcast %3 : vector<1x128xf32> to vector<64x128xf32>
    %5 = arith.addf %2, %4 : vector<64x128xf32>
    %c0_5 = arith.constant 0 : index
    %c0_6 = arith.constant 0 : index
    %6 = vector.load %arg5[%c0_5, %c0_6] : memref<64x128xf32, #tpu.memory_space<vmem>>, vector<64x128xf32>
    tpu.vector_store %arg5[%c0_5, %c0_6], %5 {strides = array<i32>} : memref<64x128xf32, #tpu.memory_space<vmem>>, vector<64x128xf32>,
    return
  }
  func.func @transform_0(%arg0: i32, %arg1: i32) -> (i32, i32) {
    %c0_i32 = arith.constant 0 : i32
    %c0_i32_0 = arith.constant 0 : i32
    return %arg0, %c0_i32 : i32, i32
  }
  func.func @transform_1(%arg0: i32, %arg1: i32) -> (i32, i32) {
    %c0_i32 = arith.constant 0 : i32
    %c0_i32_0 = arith.constant 0 : i32
    return %c0_i32, %arg1 : i32, i32
  }
  func.func @transform_2(%arg0: i32, %arg1: i32) -> (i32, i32) {
    %c0_i32 = arith.constant 0 : i32
    %c0_i32_0 = arith.constant 0 : i32
    return %c0_i32, %arg1 : i32, i32
  }
  func.func @transform_3(%arg0: i32, %arg1: i32) -> (i32, i32) {
    %c0_i32 = arith.constant 0 : i32
    return %arg0, %arg1 : i32, i32
  }
}

module attributes {stable_mosaic.version = 11 : i64} {
  func.func @_cp_lstm_recurrent_kernel(%arg0: i32, %arg1: i32, %arg2: memref<8x8x128xf32, #tpu.memory_space<vmem>>, %arg3: memref<8x128xf32, #tpu.memory_space<vmem>>, %arg4: memref<8x128xf32, #tpu.memory_space<vmem>>, %arg5: memref<128x128xbf16, #tpu.memory_space<vmem>>, %arg6: memref<128x512xf32, #tpu.memory_space<vmem>>, %arg7: memref<8x8x128xbf16, #tpu.memory_space<vmem>>, %arg8: memref<8x128xf32, #tpu.memory_space<vmem>>, %arg9: memref<8x128xf32, #tpu.memory_space<vmem>>) attributes {dimension_semantics = [#tpu.dimension_semantics<parallel>, #tpu.dimension_semantics<arbitrary>], iteration_bounds = array<i64: 1, 1>, scalar_prefetch = 0 : i64, scratch_operands = 0 : i64, tpu.core_type = #tpu.core_type<tc>, window_params = [{transform_indices = @transform_0, window_bounds = array<i64: 8, 8, 128>}, {transform_indices = @transform_1, window_bounds = array<i64: 8, 128>}, {transform_indices = @transform_2, window_bounds = array<i64: 8, 128>}, {pipeline_mode = #tpu.pipeline_mode<synchronous>, transform_indices = @transform_3, window_bounds = array<i64: 128, 128>}, {pipeline_mode = #tpu.pipeline_mode<synchronous>, transform_indices = @transform_4, window_bounds = array<i64: 128, 512>}, {transform_indices = @transform_5, window_bounds = array<i64: 8, 8, 128>}, {transform_indices = @transform_6, window_bounds = array<i64: 8, 128>}, {transform_indices = @transform_7, window_bounds = array<i64: 8, 128>}]} {
    %c0_i32 = arith.constant 0 : i32
    %0 = arith.cmpi eq, %arg1, %c0_i32 : i32
    %1 = arith.extui %0 : i1 to i32
    %c0_i32_0 = arith.constant 0 : i32
    %2 = arith.cmpi ne, %1, %c0_i32_0 : i32
    scf.if %2 {
      %c0_132 = arith.constant 0 : index
      %c0_133 = arith.constant 0 : index
      %353 = vector.load %arg3[%c0_132, %c0_133] : memref<8x128xf32, #tpu.memory_space<vmem>>, vector<8x128xf32>
      %c0_134 = arith.constant 0 : index
      %c0_135 = arith.constant 0 : index
      %354 = vector.load %arg8[%c0_134, %c0_135] : memref<8x128xf32, #tpu.memory_space<vmem>>, vector<8x128xf32>
      tpu.vector_store %arg8[%c0_134, %c0_135], %353 {strides = array<i32>} : memref<8x128xf32, #tpu.memory_space<vmem>>, vector<8x128xf32>,
      %c0_136 = arith.constant 0 : index
      %c0_137 = arith.constant 0 : index
      %355 = vector.load %arg4[%c0_136, %c0_137] : memref<8x128xf32, #tpu.memory_space<vmem>>, vector<8x128xf32>
      %c0_138 = arith.constant 0 : index
      %c0_139 = arith.constant 0 : index
      %356 = vector.load %arg9[%c0_138, %c0_139] : memref<8x128xf32, #tpu.memory_space<vmem>>, vector<8x128xf32>
      tpu.vector_store %arg9[%c0_138, %c0_139], %355 {strides = array<i32>} : memref<8x128xf32, #tpu.memory_space<vmem>>, vector<8x128xf32>,
    } else {
    }
    %c0 = arith.constant 0 : index
    %c0_1 = arith.constant 0 : index
    %3 = vector.load %arg5[%c0, %c0_1] : memref<128x128xbf16, #tpu.memory_space<vmem>>, vector<128x128xbf16>
    %c0_2 = arith.constant 0 : index
    %c0_3 = arith.constant 0 : index
    %4 = vector.load %arg6[%c0_2, %c0_3] : memref<128x512xf32, #tpu.memory_space<vmem>>, vector<128x512xf32>
    %c0_4 = arith.constant 0 : index
    %c0_5 = arith.constant 0 : index
    %5 = vector.load %arg8[%c0_4, %c0_5] : memref<8x128xf32, #tpu.memory_space<vmem>>, vector<8x128xf32>
    %c0_6 = arith.constant 0 : index
    %c0_7 = arith.constant 0 : index
    %6 = vector.load %arg9[%c0_6, %c0_7] : memref<8x128xf32, #tpu.memory_space<vmem>>, vector<8x128xf32>
    %c0_i32_8 = arith.constant 0 : i32
    %7 = arith.index_cast %c0_i32_8 : i32 to index
    %c0_9 = arith.constant 0 : index
    %c0_10 = arith.constant 0 : index
    %8 = vector.load %arg2[%7, %c0_9, %c0_10] : memref<8x8x128xf32, #tpu.memory_space<vmem>>, vector<1x8x128xf32>
    %9 = vector.shape_cast %8 : vector<1x8x128xf32> to vector<8x128xf32>
    %10 = arith.truncf %5 : vector<8x128xf32> to vector<8x128xbf16>
    %cst = arith.constant dense<0.000000e+00> : vector<8x128xf32>
    %11 = tpu.matmul %10, %3, %cst {dimension_numbers = #tpu.dot_dimension_numbers<[1], [0], [0], [1], [0, 0, 1, 1], [], []>} : vector<8x128xbf16>, vector<128x128xbf16>, vector<8x128xf32> -> vector<8x128xf32>
    %12 = arith.mulf %11, %9 : vector<8x128xf32>
    %cst_11 = arith.constant dense<0.000000e+00> : vector<8x512xf32>
    %13 = tpu.matmul %12, %4, %cst_11 {dimension_numbers = #tpu.dot_dimension_numbers<[1], [0], [0], [1], [0, 0, 1, 1], [], []>} : vector<8x128xf32>, vector<128x512xf32>, vector<8x512xf32> -> vector<8x512xf32>
    %14 = vector.extract_strided_slice %13 {offsets = [0, 0], sizes = [8, 128], strides = [1, 1]} : vector<8x512xf32> to vector<8x128xf32>
    %cst_12 = arith.constant 5.000000e-01 : f32
    %15 = vector.broadcast %cst_12 : f32 to vector<8x128xf32>
    %16 = arith.mulf %15, %14 : vector<8x128xf32>
    %17 = math.tanh %16 : vector<8x128xf32>
    %cst_13 = arith.constant 5.000000e-01 : f32
    %18 = vector.broadcast %cst_13 : f32 to vector<8x128xf32>
    %19 = arith.mulf %18, %17 : vector<8x128xf32>
    %cst_14 = arith.constant 5.000000e-01 : f32
    %20 = vector.broadcast %cst_14 : f32 to vector<8x128xf32>
    %21 = arith.addf %19, %20 : vector<8x128xf32>
    %22 = vector.extract_strided_slice %13 {offsets = [0, 128], sizes = [8, 128], strides = [1, 1]} : vector<8x512xf32> to vector<8x128xf32>
    %cst_15 = arith.constant 5.000000e-01 : f32
    %23 = vector.broadcast %cst_15 : f32 to vector<8x128xf32>
    %24 = arith.mulf %23, %22 : vector<8x128xf32>
    %25 = math.tanh %24 : vector<8x128xf32>
    %cst_16 = arith.constant 5.000000e-01 : f32
    %26 = vector.broadcast %cst_16 : f32 to vector<8x128xf32>
    %27 = arith.mulf %26, %25 : vector<8x128xf32>
    %cst_17 = arith.constant 5.000000e-01 : f32
    %28 = vector.broadcast %cst_17 : f32 to vector<8x128xf32>
    %29 = arith.addf %27, %28 : vector<8x128xf32>
    %30 = vector.extract_strided_slice %13 {offsets = [0, 256], sizes = [8, 128], strides = [1, 1]} : vector<8x512xf32> to vector<8x128xf32>
    %31 = math.tanh %30 : vector<8x128xf32>
    %32 = vector.extract_strided_slice %13 {offsets = [0, 384], sizes = [8, 128], strides = [1, 1]} : vector<8x512xf32> to vector<8x128xf32>
    %cst_18 = arith.constant 5.000000e-01 : f32
    %33 = vector.broadcast %cst_18 : f32 to vector<8x128xf32>
    %34 = arith.mulf %33, %32 : vector<8x128xf32>
    %35 = math.tanh %34 : vector<8x128xf32>
    %cst_19 = arith.constant 5.000000e-01 : f32
    %36 = vector.broadcast %cst_19 : f32 to vector<8x128xf32>
    %37 = arith.mulf %36, %35 : vector<8x128xf32>
    %cst_20 = arith.constant 5.000000e-01 : f32
    %38 = vector.broadcast %cst_20 : f32 to vector<8x128xf32>
    %39 = arith.addf %37, %38 : vector<8x128xf32>
    %40 = arith.mulf %21, %6 : vector<8x128xf32>
    %41 = arith.mulf %29, %31 : vector<8x128xf32>
    %42 = arith.addf %40, %41 : vector<8x128xf32>
    %43 = math.tanh %42 : vector<8x128xf32>
    %44 = arith.mulf %39, %43 : vector<8x128xf32>
    %45 = arith.truncf %44 : vector<8x128xf32> to vector<8x128xbf16>
    %46 = arith.index_cast %c0_i32_8 : i32 to index
    %c0_21 = arith.constant 0 : index
    %c0_22 = arith.constant 0 : index
    %47 = vector.load %arg7[%46, %c0_21, %c0_22] : memref<8x8x128xbf16, #tpu.memory_space<vmem>>, vector<1x8x128xbf16>
    %48 = vector.shape_cast %47 : vector<1x8x128xbf16> to vector<8x128xbf16>
    %49 = vector.shape_cast %45 : vector<8x128xbf16> to vector<1x8x128xbf16>
    tpu.vector_store %arg7[%46, %c0_21, %c0_22], %49 {strides = array<i32>} : memref<8x8x128xbf16, #tpu.memory_space<vmem>>, vector<1x8x128xbf16>,
    %c1_i32 = arith.constant 1 : i32
    %50 = arith.index_cast %c1_i32 : i32 to index
    %c0_23 = arith.constant 0 : index
    %c0_24 = arith.constant 0 : index
    %51 = vector.load %arg2[%50, %c0_23, %c0_24] : memref<8x8x128xf32, #tpu.memory_space<vmem>>, vector<1x8x128xf32>
    %52 = vector.shape_cast %51 : vector<1x8x128xf32> to vector<8x128xf32>
    %53 = arith.truncf %44 : vector<8x128xf32> to vector<8x128xbf16>
    %cst_25 = arith.constant dense<0.000000e+00> : vector<8x128xf32>
    %54 = tpu.matmul %53, %3, %cst_25 {dimension_numbers = #tpu.dot_dimension_numbers<[1], [0], [0], [1], [0, 0, 1, 1], [], []>} : vector<8x128xbf16>, vector<128x128xbf16>, vector<8x128xf32> -> vector<8x128xf32>
    %55 = arith.mulf %54, %52 : vector<8x128xf32>
    %cst_26 = arith.constant dense<0.000000e+00> : vector<8x512xf32>
    %56 = tpu.matmul %55, %4, %cst_26 {dimension_numbers = #tpu.dot_dimension_numbers<[1], [0], [0], [1], [0, 0, 1, 1], [], []>} : vector<8x128xf32>, vector<128x512xf32>, vector<8x512xf32> -> vector<8x512xf32>
    %57 = vector.extract_strided_slice %56 {offsets = [0, 0], sizes = [8, 128], strides = [1, 1]} : vector<8x512xf32> to vector<8x128xf32>
    %cst_27 = arith.constant 5.000000e-01 : f32
    %58 = vector.broadcast %cst_27 : f32 to vector<8x128xf32>
    %59 = arith.mulf %58, %57 : vector<8x128xf32>
    %60 = math.tanh %59 : vector<8x128xf32>
    %cst_28 = arith.constant 5.000000e-01 : f32
    %61 = vector.broadcast %cst_28 : f32 to vector<8x128xf32>
    %62 = arith.mulf %61, %60 : vector<8x128xf32>
    %cst_29 = arith.constant 5.000000e-01 : f32
    %63 = vector.broadcast %cst_29 : f32 to vector<8x128xf32>
    %64 = arith.addf %62, %63 : vector<8x128xf32>
    %65 = vector.extract_strided_slice %56 {offsets = [0, 128], sizes = [8, 128], strides = [1, 1]} : vector<8x512xf32> to vector<8x128xf32>
    %cst_30 = arith.constant 5.000000e-01 : f32
    %66 = vector.broadcast %cst_30 : f32 to vector<8x128xf32>
    %67 = arith.mulf %66, %65 : vector<8x128xf32>
    %68 = math.tanh %67 : vector<8x128xf32>
    %cst_31 = arith.constant 5.000000e-01 : f32
    %69 = vector.broadcast %cst_31 : f32 to vector<8x128xf32>
    %70 = arith.mulf %69, %68 : vector<8x128xf32>
    %cst_32 = arith.constant 5.000000e-01 : f32
    %71 = vector.broadcast %cst_32 : f32 to vector<8x128xf32>
    %72 = arith.addf %70, %71 : vector<8x128xf32>
    %73 = vector.extract_strided_slice %56 {offsets = [0, 256], sizes = [8, 128], strides = [1, 1]} : vector<8x512xf32> to vector<8x128xf32>
    %74 = math.tanh %73 : vector<8x128xf32>
    %75 = vector.extract_strided_slice %56 {offsets = [0, 384], sizes = [8, 128], strides = [1, 1]} : vector<8x512xf32> to vector<8x128xf32>
    %cst_33 = arith.constant 5.000000e-01 : f32
    %76 = vector.broadcast %cst_33 : f32 to vector<8x128xf32>
    %77 = arith.mulf %76, %75 : vector<8x128xf32>
    %78 = math.tanh %77 : vector<8x128xf32>
    %cst_34 = arith.constant 5.000000e-01 : f32
    %79 = vector.broadcast %cst_34 : f32 to vector<8x128xf32>
    %80 = arith.mulf %79, %78 : vector<8x128xf32>
    %cst_35 = arith.constant 5.000000e-01 : f32
    %81 = vector.broadcast %cst_35 : f32 to vector<8x128xf32>
    %82 = arith.addf %80, %81 : vector<8x128xf32>
    %83 = arith.mulf %64, %42 : vector<8x128xf32>
    %84 = arith.mulf %72, %74 : vector<8x128xf32>
    %85 = arith.addf %83, %84 : vector<8x128xf32>
    %86 = math.tanh %85 : vector<8x128xf32>
    %87 = arith.mulf %82, %86 : vector<8x128xf32>
    %88 = arith.truncf %87 : vector<8x128xf32> to vector<8x128xbf16>
    %89 = arith.index_cast %c1_i32 : i32 to index
    %c0_36 = arith.constant 0 : index
    %c0_37 = arith.constant 0 : index
    %90 = vector.load %arg7[%89, %c0_36, %c0_37] : memref<8x8x128xbf16, #tpu.memory_space<vmem>>, vector<1x8x128xbf16>
    %91 = vector.shape_cast %90 : vector<1x8x128xbf16> to vector<8x128xbf16>
    %92 = vector.shape_cast %88 : vector<8x128xbf16> to vector<1x8x128xbf16>
    tpu.vector_store %arg7[%89, %c0_36, %c0_37], %92 {strides = array<i32>} : memref<8x8x128xbf16, #tpu.memory_space<vmem>>, vector<1x8x128xbf16>,
    %c2_i32 = arith.constant 2 : i32
    %93 = arith.index_cast %c2_i32 : i32 to index
    %c0_38 = arith.constant 0 : index
    %c0_39 = arith.constant 0 : index
    %94 = vector.load %arg2[%93, %c0_38, %c0_39] : memref<8x8x128xf32, #tpu.memory_space<vmem>>, vector<1x8x128xf32>
    %95 = vector.shape_cast %94 : vector<1x8x128xf32> to vector<8x128xf32>
    %96 = arith.truncf %87 : vector<8x128xf32> to vector<8x128xbf16>
    %cst_40 = arith.constant dense<0.000000e+00> : vector<8x128xf32>
    %97 = tpu.matmul %96, %3, %cst_40 {dimension_numbers = #tpu.dot_dimension_numbers<[1], [0], [0], [1], [0, 0, 1, 1], [], []>} : vector<8x128xbf16>, vector<128x128xbf16>, vector<8x128xf32> -> vector<8x128xf32>
    %98 = arith.mulf %97, %95 : vector<8x128xf32>
    %cst_41 = arith.constant dense<0.000000e+00> : vector<8x512xf32>
    %99 = tpu.matmul %98, %4, %cst_41 {dimension_numbers = #tpu.dot_dimension_numbers<[1], [0], [0], [1], [0, 0, 1, 1], [], []>} : vector<8x128xf32>, vector<128x512xf32>, vector<8x512xf32> -> vector<8x512xf32>
    %100 = vector.extract_strided_slice %99 {offsets = [0, 0], sizes = [8, 128], strides = [1, 1]} : vector<8x512xf32> to vector<8x128xf32>
    %cst_42 = arith.constant 5.000000e-01 : f32
    %101 = vector.broadcast %cst_42 : f32 to vector<8x128xf32>
    %102 = arith.mulf %101, %100 : vector<8x128xf32>
    %103 = math.tanh %102 : vector<8x128xf32>
    %cst_43 = arith.constant 5.000000e-01 : f32
    %104 = vector.broadcast %cst_43 : f32 to vector<8x128xf32>
    %105 = arith.mulf %104, %103 : vector<8x128xf32>
    %cst_44 = arith.constant 5.000000e-01 : f32
    %106 = vector.broadcast %cst_44 : f32 to vector<8x128xf32>
    %107 = arith.addf %105, %106 : vector<8x128xf32>
    %108 = vector.extract_strided_slice %99 {offsets = [0, 128], sizes = [8, 128], strides = [1, 1]} : vector<8x512xf32> to vector<8x128xf32>
    %cst_45 = arith.constant 5.000000e-01 : f32
    %109 = vector.broadcast %cst_45 : f32 to vector<8x128xf32>
    %110 = arith.mulf %109, %108 : vector<8x128xf32>
    %111 = math.tanh %110 : vector<8x128xf32>
    %cst_46 = arith.constant 5.000000e-01 : f32
    %112 = vector.broadcast %cst_46 : f32 to vector<8x128xf32>
    %113 = arith.mulf %112, %111 : vector<8x128xf32>
    %cst_47 = arith.constant 5.000000e-01 : f32
    %114 = vector.broadcast %cst_47 : f32 to vector<8x128xf32>
    %115 = arith.addf %113, %114 : vector<8x128xf32>
    %116 = vector.extract_strided_slice %99 {offsets = [0, 256], sizes = [8, 128], strides = [1, 1]} : vector<8x512xf32> to vector<8x128xf32>
    %117 = math.tanh %116 : vector<8x128xf32>
    %118 = vector.extract_strided_slice %99 {offsets = [0, 384], sizes = [8, 128], strides = [1, 1]} : vector<8x512xf32> to vector<8x128xf32>
    %cst_48 = arith.constant 5.000000e-01 : f32
    %119 = vector.broadcast %cst_48 : f32 to vector<8x128xf32>
    %120 = arith.mulf %119, %118 : vector<8x128xf32>
    %121 = math.tanh %120 : vector<8x128xf32>
    %cst_49 = arith.constant 5.000000e-01 : f32
    %122 = vector.broadcast %cst_49 : f32 to vector<8x128xf32>
    %123 = arith.mulf %122, %121 : vector<8x128xf32>
    %cst_50 = arith.constant 5.000000e-01 : f32
    %124 = vector.broadcast %cst_50 : f32 to vector<8x128xf32>
    %125 = arith.addf %123, %124 : vector<8x128xf32>
    %126 = arith.mulf %107, %85 : vector<8x128xf32>
    %127 = arith.mulf %115, %117 : vector<8x128xf32>
    %128 = arith.addf %126, %127 : vector<8x128xf32>
    %129 = math.tanh %128 : vector<8x128xf32>
    %130 = arith.mulf %125, %129 : vector<8x128xf32>
    %131 = arith.truncf %130 : vector<8x128xf32> to vector<8x128xbf16>
    %132 = arith.index_cast %c2_i32 : i32 to index
    %c0_51 = arith.constant 0 : index
    %c0_52 = arith.constant 0 : index
    %133 = vector.load %arg7[%132, %c0_51, %c0_52] : memref<8x8x128xbf16, #tpu.memory_space<vmem>>, vector<1x8x128xbf16>
    %134 = vector.shape_cast %133 : vector<1x8x128xbf16> to vector<8x128xbf16>
    %135 = vector.shape_cast %131 : vector<8x128xbf16> to vector<1x8x128xbf16>
    tpu.vector_store %arg7[%132, %c0_51, %c0_52], %135 {strides = array<i32>} : memref<8x8x128xbf16, #tpu.memory_space<vmem>>, vector<1x8x128xbf16>,
    %c3_i32 = arith.constant 3 : i32
    %136 = arith.index_cast %c3_i32 : i32 to index
    %c0_53 = arith.constant 0 : index
    %c0_54 = arith.constant 0 : index
    %137 = vector.load %arg2[%136, %c0_53, %c0_54] : memref<8x8x128xf32, #tpu.memory_space<vmem>>, vector<1x8x128xf32>
    %138 = vector.shape_cast %137 : vector<1x8x128xf32> to vector<8x128xf32>
    %139 = arith.truncf %130 : vector<8x128xf32> to vector<8x128xbf16>
    %cst_55 = arith.constant dense<0.000000e+00> : vector<8x128xf32>
    %140 = tpu.matmul %139, %3, %cst_55 {dimension_numbers = #tpu.dot_dimension_numbers<[1], [0], [0], [1], [0, 0, 1, 1], [], []>} : vector<8x128xbf16>, vector<128x128xbf16>, vector<8x128xf32> -> vector<8x128xf32>
    %141 = arith.mulf %140, %138 : vector<8x128xf32>
    %cst_56 = arith.constant dense<0.000000e+00> : vector<8x512xf32>
    %142 = tpu.matmul %141, %4, %cst_56 {dimension_numbers = #tpu.dot_dimension_numbers<[1], [0], [0], [1], [0, 0, 1, 1], [], []>} : vector<8x128xf32>, vector<128x512xf32>, vector<8x512xf32> -> vector<8x512xf32>
    %143 = vector.extract_strided_slice %142 {offsets = [0, 0], sizes = [8, 128], strides = [1, 1]} : vector<8x512xf32> to vector<8x128xf32>
    %cst_57 = arith.constant 5.000000e-01 : f32
    %144 = vector.broadcast %cst_57 : f32 to vector<8x128xf32>
    %145 = arith.mulf %144, %143 : vector<8x128xf32>
    %146 = math.tanh %145 : vector<8x128xf32>
    %cst_58 = arith.constant 5.000000e-01 : f32
    %147 = vector.broadcast %cst_58 : f32 to vector<8x128xf32>
    %148 = arith.mulf %147, %146 : vector<8x128xf32>
    %cst_59 = arith.constant 5.000000e-01 : f32
    %149 = vector.broadcast %cst_59 : f32 to vector<8x128xf32>
    %150 = arith.addf %148, %149 : vector<8x128xf32>
    %151 = vector.extract_strided_slice %142 {offsets = [0, 128], sizes = [8, 128], strides = [1, 1]} : vector<8x512xf32> to vector<8x128xf32>
    %cst_60 = arith.constant 5.000000e-01 : f32
    %152 = vector.broadcast %cst_60 : f32 to vector<8x128xf32>
    %153 = arith.mulf %152, %151 : vector<8x128xf32>
    %154 = math.tanh %153 : vector<8x128xf32>
    %cst_61 = arith.constant 5.000000e-01 : f32
    %155 = vector.broadcast %cst_61 : f32 to vector<8x128xf32>
    %156 = arith.mulf %155, %154 : vector<8x128xf32>
    %cst_62 = arith.constant 5.000000e-01 : f32
    %157 = vector.broadcast %cst_62 : f32 to vector<8x128xf32>
    %158 = arith.addf %156, %157 : vector<8x128xf32>
    %159 = vector.extract_strided_slice %142 {offsets = [0, 256], sizes = [8, 128], strides = [1, 1]} : vector<8x512xf32> to vector<8x128xf32>
    %160 = math.tanh %159 : vector<8x128xf32>
    %161 = vector.extract_strided_slice %142 {offsets = [0, 384], sizes = [8, 128], strides = [1, 1]} : vector<8x512xf32> to vector<8x128xf32>
    %cst_63 = arith.constant 5.000000e-01 : f32
    %162 = vector.broadcast %cst_63 : f32 to vector<8x128xf32>
    %163 = arith.mulf %162, %161 : vector<8x128xf32>
    %164 = math.tanh %163 : vector<8x128xf32>
    %cst_64 = arith.constant 5.000000e-01 : f32
    %165 = vector.broadcast %cst_64 : f32 to vector<8x128xf32>
    %166 = arith.mulf %165, %164 : vector<8x128xf32>
    %cst_65 = arith.constant 5.000000e-01 : f32
    %167 = vector.broadcast %cst_65 : f32 to vector<8x128xf32>
    %168 = arith.addf %166, %167 : vector<8x128xf32>
    %169 = arith.mulf %150, %128 : vector<8x128xf32>
    %170 = arith.mulf %158, %160 : vector<8x128xf32>
    %171 = arith.addf %169, %170 : vector<8x128xf32>
    %172 = math.tanh %171 : vector<8x128xf32>
    %173 = arith.mulf %168, %172 : vector<8x128xf32>
    %174 = arith.truncf %173 : vector<8x128xf32> to vector<8x128xbf16>
    %175 = arith.index_cast %c3_i32 : i32 to index
    %c0_66 = arith.constant 0 : index
    %c0_67 = arith.constant 0 : index
    %176 = vector.load %arg7[%175, %c0_66, %c0_67] : memref<8x8x128xbf16, #tpu.memory_space<vmem>>, vector<1x8x128xbf16>
    %177 = vector.shape_cast %176 : vector<1x8x128xbf16> to vector<8x128xbf16>
    %178 = vector.shape_cast %174 : vector<8x128xbf16> to vector<1x8x128xbf16>
    tpu.vector_store %arg7[%175, %c0_66, %c0_67], %178 {strides = array<i32>} : memref<8x8x128xbf16, #tpu.memory_space<vmem>>, vector<1x8x128xbf16>,
    %c4_i32 = arith.constant 4 : i32
    %179 = arith.index_cast %c4_i32 : i32 to index
    %c0_68 = arith.constant 0 : index
    %c0_69 = arith.constant 0 : index
    %180 = vector.load %arg2[%179, %c0_68, %c0_69] : memref<8x8x128xf32, #tpu.memory_space<vmem>>, vector<1x8x128xf32>
    %181 = vector.shape_cast %180 : vector<1x8x128xf32> to vector<8x128xf32>
    %182 = arith.truncf %173 : vector<8x128xf32> to vector<8x128xbf16>
    %cst_70 = arith.constant dense<0.000000e+00> : vector<8x128xf32>
    %183 = tpu.matmul %182, %3, %cst_70 {dimension_numbers = #tpu.dot_dimension_numbers<[1], [0], [0], [1], [0, 0, 1, 1], [], []>} : vector<8x128xbf16>, vector<128x128xbf16>, vector<8x128xf32> -> vector<8x128xf32>
    %184 = arith.mulf %183, %181 : vector<8x128xf32>
    %cst_71 = arith.constant dense<0.000000e+00> : vector<8x512xf32>
    %185 = tpu.matmul %184, %4, %cst_71 {dimension_numbers = #tpu.dot_dimension_numbers<[1], [0], [0], [1], [0, 0, 1, 1], [], []>} : vector<8x128xf32>, vector<128x512xf32>, vector<8x512xf32> -> vector<8x512xf32>
    %186 = vector.extract_strided_slice %185 {offsets = [0, 0], sizes = [8, 128], strides = [1, 1]} : vector<8x512xf32> to vector<8x128xf32>
    %cst_72 = arith.constant 5.000000e-01 : f32
    %187 = vector.broadcast %cst_72 : f32 to vector<8x128xf32>
    %188 = arith.mulf %187, %186 : vector<8x128xf32>
    %189 = math.tanh %188 : vector<8x128xf32>
    %cst_73 = arith.constant 5.000000e-01 : f32
    %190 = vector.broadcast %cst_73 : f32 to vector<8x128xf32>
    %191 = arith.mulf %190, %189 : vector<8x128xf32>
    %cst_74 = arith.constant 5.000000e-01 : f32
    %192 = vector.broadcast %cst_74 : f32 to vector<8x128xf32>
    %193 = arith.addf %191, %192 : vector<8x128xf32>
    %194 = vector.extract_strided_slice %185 {offsets = [0, 128], sizes = [8, 128], strides = [1, 1]} : vector<8x512xf32> to vector<8x128xf32>
    %cst_75 = arith.constant 5.000000e-01 : f32
    %195 = vector.broadcast %cst_75 : f32 to vector<8x128xf32>
    %196 = arith.mulf %195, %194 : vector<8x128xf32>
    %197 = math.tanh %196 : vector<8x128xf32>
    %cst_76 = arith.constant 5.000000e-01 : f32
    %198 = vector.broadcast %cst_76 : f32 to vector<8x128xf32>
    %199 = arith.mulf %198, %197 : vector<8x128xf32>
    %cst_77 = arith.constant 5.000000e-01 : f32
    %200 = vector.broadcast %cst_77 : f32 to vector<8x128xf32>
    %201 = arith.addf %199, %200 : vector<8x128xf32>
    %202 = vector.extract_strided_slice %185 {offsets = [0, 256], sizes = [8, 128], strides = [1, 1]} : vector<8x512xf32> to vector<8x128xf32>
    %203 = math.tanh %202 : vector<8x128xf32>
    %204 = vector.extract_strided_slice %185 {offsets = [0, 384], sizes = [8, 128], strides = [1, 1]} : vector<8x512xf32> to vector<8x128xf32>
    %cst_78 = arith.constant 5.000000e-01 : f32
    %205 = vector.broadcast %cst_78 : f32 to vector<8x128xf32>
    %206 = arith.mulf %205, %204 : vector<8x128xf32>
    %207 = math.tanh %206 : vector<8x128xf32>
    %cst_79 = arith.constant 5.000000e-01 : f32
    %208 = vector.broadcast %cst_79 : f32 to vector<8x128xf32>
    %209 = arith.mulf %208, %207 : vector<8x128xf32>
    %cst_80 = arith.constant 5.000000e-01 : f32
    %210 = vector.broadcast %cst_80 : f32 to vector<8x128xf32>
    %211 = arith.addf %209, %210 : vector<8x128xf32>
    %212 = arith.mulf %193, %171 : vector<8x128xf32>
    %213 = arith.mulf %201, %203 : vector<8x128xf32>
    %214 = arith.addf %212, %213 : vector<8x128xf32>
    %215 = math.tanh %214 : vector<8x128xf32>
    %216 = arith.mulf %211, %215 : vector<8x128xf32>
    %217 = arith.truncf %216 : vector<8x128xf32> to vector<8x128xbf16>
    %218 = arith.index_cast %c4_i32 : i32 to index
    %c0_81 = arith.constant 0 : index
    %c0_82 = arith.constant 0 : index
    %219 = vector.load %arg7[%218, %c0_81, %c0_82] : memref<8x8x128xbf16, #tpu.memory_space<vmem>>, vector<1x8x128xbf16>
    %220 = vector.shape_cast %219 : vector<1x8x128xbf16> to vector<8x128xbf16>
    %221 = vector.shape_cast %217 : vector<8x128xbf16> to vector<1x8x128xbf16>
    tpu.vector_store %arg7[%218, %c0_81, %c0_82], %221 {strides = array<i32>} : memref<8x8x128xbf16, #tpu.memory_space<vmem>>, vector<1x8x128xbf16>,
    %c5_i32 = arith.constant 5 : i32
    %222 = arith.index_cast %c5_i32 : i32 to index
    %c0_83 = arith.constant 0 : index
    %c0_84 = arith.constant 0 : index
    %223 = vector.load %arg2[%222, %c0_83, %c0_84] : memref<8x8x128xf32, #tpu.memory_space<vmem>>, vector<1x8x128xf32>
    %224 = vector.shape_cast %223 : vector<1x8x128xf32> to vector<8x128xf32>
    %225 = arith.truncf %216 : vector<8x128xf32> to vector<8x128xbf16>
    %cst_85 = arith.constant dense<0.000000e+00> : vector<8x128xf32>
    %226 = tpu.matmul %225, %3, %cst_85 {dimension_numbers = #tpu.dot_dimension_numbers<[1], [0], [0], [1], [0, 0, 1, 1], [], []>} : vector<8x128xbf16>, vector<128x128xbf16>, vector<8x128xf32> -> vector<8x128xf32>
    %227 = arith.mulf %226, %224 : vector<8x128xf32>
    %cst_86 = arith.constant dense<0.000000e+00> : vector<8x512xf32>
    %228 = tpu.matmul %227, %4, %cst_86 {dimension_numbers = #tpu.dot_dimension_numbers<[1], [0], [0], [1], [0, 0, 1, 1], [], []>} : vector<8x128xf32>, vector<128x512xf32>, vector<8x512xf32> -> vector<8x512xf32>
    %229 = vector.extract_strided_slice %228 {offsets = [0, 0], sizes = [8, 128], strides = [1, 1]} : vector<8x512xf32> to vector<8x128xf32>
    %cst_87 = arith.constant 5.000000e-01 : f32
    %230 = vector.broadcast %cst_87 : f32 to vector<8x128xf32>
    %231 = arith.mulf %230, %229 : vector<8x128xf32>
    %232 = math.tanh %231 : vector<8x128xf32>
    %cst_88 = arith.constant 5.000000e-01 : f32
    %233 = vector.broadcast %cst_88 : f32 to vector<8x128xf32>
    %234 = arith.mulf %233, %232 : vector<8x128xf32>
    %cst_89 = arith.constant 5.000000e-01 : f32
    %235 = vector.broadcast %cst_89 : f32 to vector<8x128xf32>
    %236 = arith.addf %234, %235 : vector<8x128xf32>
    %237 = vector.extract_strided_slice %228 {offsets = [0, 128], sizes = [8, 128], strides = [1, 1]} : vector<8x512xf32> to vector<8x128xf32>
    %cst_90 = arith.constant 5.000000e-01 : f32
    %238 = vector.broadcast %cst_90 : f32 to vector<8x128xf32>
    %239 = arith.mulf %238, %237 : vector<8x128xf32>
    %240 = math.tanh %239 : vector<8x128xf32>
    %cst_91 = arith.constant 5.000000e-01 : f32
    %241 = vector.broadcast %cst_91 : f32 to vector<8x128xf32>
    %242 = arith.mulf %241, %240 : vector<8x128xf32>
    %cst_92 = arith.constant 5.000000e-01 : f32
    %243 = vector.broadcast %cst_92 : f32 to vector<8x128xf32>
    %244 = arith.addf %242, %243 : vector<8x128xf32>
    %245 = vector.extract_strided_slice %228 {offsets = [0, 256], sizes = [8, 128], strides = [1, 1]} : vector<8x512xf32> to vector<8x128xf32>
    %246 = math.tanh %245 : vector<8x128xf32>
    %247 = vector.extract_strided_slice %228 {offsets = [0, 384], sizes = [8, 128], strides = [1, 1]} : vector<8x512xf32> to vector<8x128xf32>
    %cst_93 = arith.constant 5.000000e-01 : f32
    %248 = vector.broadcast %cst_93 : f32 to vector<8x128xf32>
    %249 = arith.mulf %248, %247 : vector<8x128xf32>
    %250 = math.tanh %249 : vector<8x128xf32>
    %cst_94 = arith.constant 5.000000e-01 : f32
    %251 = vector.broadcast %cst_94 : f32 to vector<8x128xf32>
    %252 = arith.mulf %251, %250 : vector<8x128xf32>
    %cst_95 = arith.constant 5.000000e-01 : f32
    %253 = vector.broadcast %cst_95 : f32 to vector<8x128xf32>
    %254 = arith.addf %252, %253 : vector<8x128xf32>
    %255 = arith.mulf %236, %214 : vector<8x128xf32>
    %256 = arith.mulf %244, %246 : vector<8x128xf32>
    %257 = arith.addf %255, %256 : vector<8x128xf32>
    %258 = math.tanh %257 : vector<8x128xf32>
    %259 = arith.mulf %254, %258 : vector<8x128xf32>
    %260 = arith.truncf %259 : vector<8x128xf32> to vector<8x128xbf16>
    %261 = arith.index_cast %c5_i32 : i32 to index
    %c0_96 = arith.constant 0 : index
    %c0_97 = arith.constant 0 : index
    %262 = vector.load %arg7[%261, %c0_96, %c0_97] : memref<8x8x128xbf16, #tpu.memory_space<vmem>>, vector<1x8x128xbf16>
    %263 = vector.shape_cast %262 : vector<1x8x128xbf16> to vector<8x128xbf16>
    %264 = vector.shape_cast %260 : vector<8x128xbf16> to vector<1x8x128xbf16>
    tpu.vector_store %arg7[%261, %c0_96, %c0_97], %264 {strides = array<i32>} : memref<8x8x128xbf16, #tpu.memory_space<vmem>>, vector<1x8x128xbf16>,
    %c6_i32 = arith.constant 6 : i32
    %265 = arith.index_cast %c6_i32 : i32 to index
    %c0_98 = arith.constant 0 : index
    %c0_99 = arith.constant 0 : index
    %266 = vector.load %arg2[%265, %c0_98, %c0_99] : memref<8x8x128xf32, #tpu.memory_space<vmem>>, vector<1x8x128xf32>
    %267 = vector.shape_cast %266 : vector<1x8x128xf32> to vector<8x128xf32>
    %268 = arith.truncf %259 : vector<8x128xf32> to vector<8x128xbf16>
    %cst_100 = arith.constant dense<0.000000e+00> : vector<8x128xf32>
    %269 = tpu.matmul %268, %3, %cst_100 {dimension_numbers = #tpu.dot_dimension_numbers<[1], [0], [0], [1], [0, 0, 1, 1], [], []>} : vector<8x128xbf16>, vector<128x128xbf16>, vector<8x128xf32> -> vector<8x128xf32>
    %270 = arith.mulf %269, %267 : vector<8x128xf32>
    %cst_101 = arith.constant dense<0.000000e+00> : vector<8x512xf32>
    %271 = tpu.matmul %270, %4, %cst_101 {dimension_numbers = #tpu.dot_dimension_numbers<[1], [0], [0], [1], [0, 0, 1, 1], [], []>} : vector<8x128xf32>, vector<128x512xf32>, vector<8x512xf32> -> vector<8x512xf32>
    %272 = vector.extract_strided_slice %271 {offsets = [0, 0], sizes = [8, 128], strides = [1, 1]} : vector<8x512xf32> to vector<8x128xf32>
    %cst_102 = arith.constant 5.000000e-01 : f32
    %273 = vector.broadcast %cst_102 : f32 to vector<8x128xf32>
    %274 = arith.mulf %273, %272 : vector<8x128xf32>
    %275 = math.tanh %274 : vector<8x128xf32>
    %cst_103 = arith.constant 5.000000e-01 : f32
    %276 = vector.broadcast %cst_103 : f32 to vector<8x128xf32>
    %277 = arith.mulf %276, %275 : vector<8x128xf32>
    %cst_104 = arith.constant 5.000000e-01 : f32
    %278 = vector.broadcast %cst_104 : f32 to vector<8x128xf32>
    %279 = arith.addf %277, %278 : vector<8x128xf32>
    %280 = vector.extract_strided_slice %271 {offsets = [0, 128], sizes = [8, 128], strides = [1, 1]} : vector<8x512xf32> to vector<8x128xf32>
    %cst_105 = arith.constant 5.000000e-01 : f32
    %281 = vector.broadcast %cst_105 : f32 to vector<8x128xf32>
    %282 = arith.mulf %281, %280 : vector<8x128xf32>
    %283 = math.tanh %282 : vector<8x128xf32>
    %cst_106 = arith.constant 5.000000e-01 : f32
    %284 = vector.broadcast %cst_106 : f32 to vector<8x128xf32>
    %285 = arith.mulf %284, %283 : vector<8x128xf32>
    %cst_107 = arith.constant 5.000000e-01 : f32
    %286 = vector.broadcast %cst_107 : f32 to vector<8x128xf32>
    %287 = arith.addf %285, %286 : vector<8x128xf32>
    %288 = vector.extract_strided_slice %271 {offsets = [0, 256], sizes = [8, 128], strides = [1, 1]} : vector<8x512xf32> to vector<8x128xf32>
    %289 = math.tanh %288 : vector<8x128xf32>
    %290 = vector.extract_strided_slice %271 {offsets = [0, 384], sizes = [8, 128], strides = [1, 1]} : vector<8x512xf32> to vector<8x128xf32>
    %cst_108 = arith.constant 5.000000e-01 : f32
    %291 = vector.broadcast %cst_108 : f32 to vector<8x128xf32>
    %292 = arith.mulf %291, %290 : vector<8x128xf32>
    %293 = math.tanh %292 : vector<8x128xf32>
    %cst_109 = arith.constant 5.000000e-01 : f32
    %294 = vector.broadcast %cst_109 : f32 to vector<8x128xf32>
    %295 = arith.mulf %294, %293 : vector<8x128xf32>
    %cst_110 = arith.constant 5.000000e-01 : f32
    %296 = vector.broadcast %cst_110 : f32 to vector<8x128xf32>
    %297 = arith.addf %295, %296 : vector<8x128xf32>
    %298 = arith.mulf %279, %257 : vector<8x128xf32>
    %299 = arith.mulf %287, %289 : vector<8x128xf32>
    %300 = arith.addf %298, %299 : vector<8x128xf32>
    %301 = math.tanh %300 : vector<8x128xf32>
    %302 = arith.mulf %297, %301 : vector<8x128xf32>
    %303 = arith.truncf %302 : vector<8x128xf32> to vector<8x128xbf16>
    %304 = arith.index_cast %c6_i32 : i32 to index
    %c0_111 = arith.constant 0 : index
    %c0_112 = arith.constant 0 : index
    %305 = vector.load %arg7[%304, %c0_111, %c0_112] : memref<8x8x128xbf16, #tpu.memory_space<vmem>>, vector<1x8x128xbf16>
    %306 = vector.shape_cast %305 : vector<1x8x128xbf16> to vector<8x128xbf16>
    %307 = vector.shape_cast %303 : vector<8x128xbf16> to vector<1x8x128xbf16>
    tpu.vector_store %arg7[%304, %c0_111, %c0_112], %307 {strides = array<i32>} : memref<8x8x128xbf16, #tpu.memory_space<vmem>>, vector<1x8x128xbf16>,
    %c7_i32 = arith.constant 7 : i32
    %308 = arith.index_cast %c7_i32 : i32 to index
    %c0_113 = arith.constant 0 : index
    %c0_114 = arith.constant 0 : index
    %309 = vector.load %arg2[%308, %c0_113, %c0_114] : memref<8x8x128xf32, #tpu.memory_space<vmem>>, vector<1x8x128xf32>
    %310 = vector.shape_cast %309 : vector<1x8x128xf32> to vector<8x128xf32>
    %311 = arith.truncf %302 : vector<8x128xf32> to vector<8x128xbf16>
    %cst_115 = arith.constant dense<0.000000e+00> : vector<8x128xf32>
    %312 = tpu.matmul %311, %3, %cst_115 {dimension_numbers = #tpu.dot_dimension_numbers<[1], [0], [0], [1], [0, 0, 1, 1], [], []>} : vector<8x128xbf16>, vector<128x128xbf16>, vector<8x128xf32> -> vector<8x128xf32>
    %313 = arith.mulf %312, %310 : vector<8x128xf32>
    %cst_116 = arith.constant dense<0.000000e+00> : vector<8x512xf32>
    %314 = tpu.matmul %313, %4, %cst_116 {dimension_numbers = #tpu.dot_dimension_numbers<[1], [0], [0], [1], [0, 0, 1, 1], [], []>} : vector<8x128xf32>, vector<128x512xf32>, vector<8x512xf32> -> vector<8x512xf32>
    %315 = vector.extract_strided_slice %314 {offsets = [0, 0], sizes = [8, 128], strides = [1, 1]} : vector<8x512xf32> to vector<8x128xf32>
    %cst_117 = arith.constant 5.000000e-01 : f32
    %316 = vector.broadcast %cst_117 : f32 to vector<8x128xf32>
    %317 = arith.mulf %316, %315 : vector<8x128xf32>
    %318 = math.tanh %317 : vector<8x128xf32>
    %cst_118 = arith.constant 5.000000e-01 : f32
    %319 = vector.broadcast %cst_118 : f32 to vector<8x128xf32>
    %320 = arith.mulf %319, %318 : vector<8x128xf32>
    %cst_119 = arith.constant 5.000000e-01 : f32
    %321 = vector.broadcast %cst_119 : f32 to vector<8x128xf32>
    %322 = arith.addf %320, %321 : vector<8x128xf32>
    %323 = vector.extract_strided_slice %314 {offsets = [0, 128], sizes = [8, 128], strides = [1, 1]} : vector<8x512xf32> to vector<8x128xf32>
    %cst_120 = arith.constant 5.000000e-01 : f32
    %324 = vector.broadcast %cst_120 : f32 to vector<8x128xf32>
    %325 = arith.mulf %324, %323 : vector<8x128xf32>
    %326 = math.tanh %325 : vector<8x128xf32>
    %cst_121 = arith.constant 5.000000e-01 : f32
    %327 = vector.broadcast %cst_121 : f32 to vector<8x128xf32>
    %328 = arith.mulf %327, %326 : vector<8x128xf32>
    %cst_122 = arith.constant 5.000000e-01 : f32
    %329 = vector.broadcast %cst_122 : f32 to vector<8x128xf32>
    %330 = arith.addf %328, %329 : vector<8x128xf32>
    %331 = vector.extract_strided_slice %314 {offsets = [0, 256], sizes = [8, 128], strides = [1, 1]} : vector<8x512xf32> to vector<8x128xf32>
    %332 = math.tanh %331 : vector<8x128xf32>
    %333 = vector.extract_strided_slice %314 {offsets = [0, 384], sizes = [8, 128], strides = [1, 1]} : vector<8x512xf32> to vector<8x128xf32>
    %cst_123 = arith.constant 5.000000e-01 : f32
    %334 = vector.broadcast %cst_123 : f32 to vector<8x128xf32>
    %335 = arith.mulf %334, %333 : vector<8x128xf32>
    %336 = math.tanh %335 : vector<8x128xf32>
    %cst_124 = arith.constant 5.000000e-01 : f32
    %337 = vector.broadcast %cst_124 : f32 to vector<8x128xf32>
    %338 = arith.mulf %337, %336 : vector<8x128xf32>
    %cst_125 = arith.constant 5.000000e-01 : f32
    %339 = vector.broadcast %cst_125 : f32 to vector<8x128xf32>
    %340 = arith.addf %338, %339 : vector<8x128xf32>
    %341 = arith.mulf %322, %300 : vector<8x128xf32>
    %342 = arith.mulf %330, %332 : vector<8x128xf32>
    %343 = arith.addf %341, %342 : vector<8x128xf32>
    %344 = math.tanh %343 : vector<8x128xf32>
    %345 = arith.mulf %340, %344 : vector<8x128xf32>
    %346 = arith.truncf %345 : vector<8x128xf32> to vector<8x128xbf16>
    %347 = arith.index_cast %c7_i32 : i32 to index
    %c0_126 = arith.constant 0 : index
    %c0_127 = arith.constant 0 : index
    %348 = vector.load %arg7[%347, %c0_126, %c0_127] : memref<8x8x128xbf16, #tpu.memory_space<vmem>>, vector<1x8x128xbf16>
    %349 = vector.shape_cast %348 : vector<1x8x128xbf16> to vector<8x128xbf16>
    %350 = vector.shape_cast %346 : vector<8x128xbf16> to vector<1x8x128xbf16>
    tpu.vector_store %arg7[%347, %c0_126, %c0_127], %350 {strides = array<i32>} : memref<8x8x128xbf16, #tpu.memory_space<vmem>>, vector<1x8x128xbf16>,
    %c8_i32 = arith.constant 8 : i32
    %c0_128 = arith.constant 0 : index
    %c0_129 = arith.constant 0 : index
    %351 = vector.load %arg8[%c0_128, %c0_129] : memref<8x128xf32, #tpu.memory_space<vmem>>, vector<8x128xf32>
    tpu.vector_store %arg8[%c0_128, %c0_129], %345 {strides = array<i32>} : memref<8x128xf32, #tpu.memory_space<vmem>>, vector<8x128xf32>,
    %c0_130 = arith.constant 0 : index
    %c0_131 = arith.constant 0 : index
    %352 = vector.load %arg9[%c0_130, %c0_131] : memref<8x128xf32, #tpu.memory_space<vmem>>, vector<8x128xf32>
    tpu.vector_store %arg9[%c0_130, %c0_131], %343 {strides = array<i32>} : memref<8x128xf32, #tpu.memory_space<vmem>>, vector<8x128xf32>,
    return
  }
  func.func @transform_0(%arg0: i32, %arg1: i32) -> (i32, i32, i32) {
    %c0_i32 = arith.constant 0 : i32
    %c0_i32_0 = arith.constant 0 : i32
    return %arg1, %arg0, %c0_i32 : i32, i32, i32
  }
  func.func @transform_1(%arg0: i32, %arg1: i32) -> (i32, i32) {
    %c0_i32 = arith.constant 0 : i32
    %c0_i32_0 = arith.constant 0 : i32
    return %arg0, %c0_i32 : i32, i32
  }
  func.func @transform_2(%arg0: i32, %arg1: i32) -> (i32, i32) {
    %c0_i32 = arith.constant 0 : i32
    %c0_i32_0 = arith.constant 0 : i32
    return %arg0, %c0_i32 : i32, i32
  }
  func.func @transform_3(%arg0: i32, %arg1: i32) -> (i32, i32) {
    %c0_i32 = arith.constant 0 : i32
    %c0_i32_0 = arith.constant 0 : i32
    %c0_i32_1 = arith.constant 0 : i32
    return %c0_i32, %c0_i32_0 : i32, i32
  }
  func.func @transform_4(%arg0: i32, %arg1: i32) -> (i32, i32) {
    %c0_i32 = arith.constant 0 : i32
    %c0_i32_0 = arith.constant 0 : i32
    %c0_i32_1 = arith.constant 0 : i32
    return %c0_i32, %c0_i32_0 : i32, i32
  }
  func.func @transform_5(%arg0: i32, %arg1: i32) -> (i32, i32, i32) {
    %c0_i32 = arith.constant 0 : i32
    %c0_i32_0 = arith.constant 0 : i32
    return %arg1, %arg0, %c0_i32 : i32, i32, i32
  }
  func.func @transform_6(%arg0: i32, %arg1: i32) -> (i32, i32) {
    %c0_i32 = arith.constant 0 : i32
    %c0_i32_0 = arith.constant 0 : i32
    return %arg0, %c0_i32 : i32, i32
  }
  func.func @transform_7(%arg0: i32, %arg1: i32) -> (i32, i32) {
    %c0_i32 = arith.constant 0 : i32
    %c0_i32_0 = arith.constant 0 : i32
    return %arg0, %c0_i32 : i32, i32
  }
}

</mosaic_0001>

<llo_original>
// kernel: cp_lstm_forward.3
$region0: #{cp_lstm_forward.3}
  #allocation0 [shape = 'u32[]', space=smem, size = 0x4, offset = 0x4, fixed_abs, tag = 'smem constant byte address 0x4 - core index']
  #allocation1 [shape = 'u32[72,128]{1,0:T(1,128)}', space=vmem, size = 0x9000, scoped, tag = 'internal scratch']
  %s0 = inlined_call_operand.vmem [shape: bf16[32,128], index: 0, kind: input, shape index: {}]
  %s1 = inlined_call_operand.vmem [shape: bf16[128,128], index: 1, kind: input, shape index: {}]
  %s2 = inlined_call_operand.vmem [shape: f32[32,128], index: 2, kind: output, shape index: {}]
  %s3 = sld [smem:[#allocation0]]
  $region18: #{cp_lstm_forward.3} parent=0
    _
  %s5 = ssub.s32 1, %s3
  %s6 = scalar_select 0, %s5, %s3
  // Predicated region
  $region2: #{cp_lstm_forward.3} parent=0 // pred_check
    _
  $region3: #{cp_lstm_forward.3} parent=0 // pred_check_branch
    %8 = sbr.rel (0) target = $region5
  $region4: #{cp_lstm_forward.3} parent=0 // pred_region
    _
  $region5: #{cp_lstm_forward.3} parent=0 // pred_fallthru
    _
  // Predicated region
  $region6: #{cp_lstm_forward.3} parent=0 // pred_check
    _
  $region7: #{cp_lstm_forward.3} parent=0 // pred_check_branch
    %10 = sbr.rel (0) target = $region9
  $region8: #{cp_lstm_forward.3} parent=0 // pred_region
    _
  $region9: #{cp_lstm_forward.3} parent=0 // pred_fallthru
    _
  %v11 = vld [vmem:[%s0] sm:$0xf]
  %v12 = vld [vmem:[%s0 + $0x4] sm:$0xf]
  %v13 = vld [vmem:[%s0 + $0x8] sm:$0xf]
  %v14 = vld [vmem:[%s0 + $0xc] sm:$0xf]
  %v15 = vld [vmem:[%s1] sm:$0xf]
  %v16 = vld [vmem:[%s1 + $0x4] sm:$0xf]
  %v17 = vld [vmem:[%s1 + $0x8] sm:$0xf]
  %v18 = vld [vmem:[%s1 + $0xc] sm:$0xf]
  %v19 = vld [vmem:[%s1 + $0x10] sm:$0xf]
  %v20 = vld [vmem:[%s1 + $0x14] sm:$0xf]
  %v21 = vld [vmem:[%s1 + $0x18] sm:$0xf]
  %v22 = vld [vmem:[%s1 + $0x1c] sm:$0xf]
  %v23 = vld [vmem:[%s1 + $0x20] sm:$0xf]
  %v24 = vld [vmem:[%s1 + $0x24] sm:$0xf]
  %v25 = vld [vmem:[%s1 + $0x28] sm:$0xf]
  %v26 = vld [vmem:[%s1 + $0x2c] sm:$0xf]
  %v27 = vld [vmem:[%s1 + $0x30] sm:$0xf]
  %v28 = vld [vmem:[%s1 + $0x34] sm:$0xf]
  %v29 = vld [vmem:[%s1 + $0x38] sm:$0xf]
  %v30 = vld [vmem:[%s1 + $0x3c] sm:$0xf]
  %v35 = vunpack.c.l.b16 %v11
  %v36 = vunpack.c.l.b16 %v12
  %v37 = vunpack.c.l.b16 %v13
  %v38 = vunpack.c.l.b16 %v14
  %v39 = vpack.c.b16 %v36, %v35
  %v40 = vpack.c.b16 %v38, %v37
  %v59 = vunpack.c.l.b16 %v15
  %v60 = vunpack.c.l.b16 %v16
  %v61 = vunpack.c.l.b16 %v17
  %v62 = vunpack.c.l.b16 %v18
  %v63 = vunpack.c.l.b16 %v19
  %v64 = vunpack.c.l.b16 %v20
  %v65 = vunpack.c.l.b16 %v21
  %v66 = vunpack.c.l.b16 %v22
  %v67 = vunpack.c.l.b16 %v23
  %v68 = vunpack.c.l.b16 %v24
  %v69 = vunpack.c.l.b16 %v25
  %v70 = vunpack.c.l.b16 %v26
  %v71 = vunpack.c.l.b16 %v27
  %v72 = vunpack.c.l.b16 %v28
  %v73 = vunpack.c.l.b16 %v29
  %v74 = vunpack.c.l.b16 %v30
  %v75 = vpack.c.b16 %v60, %v59
  %v76 = vpack.c.b16 %v62, %v61
  %v77 = vpack.c.b16 %v64, %v63
  %v78 = vpack.c.b16 %v66, %v65
  %v79 = vpack.c.b16 %v68, %v67
  %v80 = vpack.c.b16 %v70, %v69
  %v81 = vpack.c.b16 %v72, %v71
  %v82 = vpack.c.b16 %v74, %v73
  %91 = vmatpush.bf16.msra.mxu0 %v82
  %92 = vmatpush.bf16.msra.mxu0 %v81
  %93 = vmatpush.bf16.msra.mxu0 %v80
  %94 = vmatpush.bf16.msra.mxu0 %v79
  %95 = vmatpush.bf16.msra.mxu0 %v78
  %96 = vmatpush.bf16.msra.mxu0 %v77
  %97 = vmatpush.bf16.msra.mxu0 %v76
  %98 = vmatpush.bf16.msra.mxu0 %v75
  %99 = vmatmul.bf16.gmra.mxu0 %v39
  %v100 = vpop.f32.mrf.mxu0
  %v101 = vadd.f32 0.0, %v100
  %v102 = vpop.f32.mrf.mxu0
  %v103 = vadd.f32 0.0, %v102
  %104 = vmatmul.bf16.gmra.mxu0 %v40
  %v105 = vpop.f32.mrf.mxu0
  %v106 = vadd.f32 0.0, %v105
  %v107 = vpop.f32.mrf.mxu0
  %v108 = vadd.f32 0.0, %v107
  %109 = vdwg.mxu0
  %110 = vst [vmem:[%s2] sm:$0xff] %v101
  %111 = vst [vmem:[%s2 + $0x8] sm:$0xff] %v103
  %112 = vst [vmem:[%s2 + $0x10] sm:$0xff] %v106
  %113 = vst [vmem:[%s2 + $0x18] sm:$0xff] %v108
  // Predicated region
  $region10: #{cp_lstm_forward.3} parent=0 // pred_check
    _
  $region11: #{cp_lstm_forward.3} parent=0 // pred_check_branch
    %115 = sbr.rel (0) target = $region13
  $region12: #{cp_lstm_forward.3} parent=0 // pred_region
    _
  $region13: #{cp_lstm_forward.3} parent=0 // pred_fallthru
    _
  // Predicated region
  $region14: #{cp_lstm_forward.3} parent=0 // pred_check
    _
  $region15: #{cp_lstm_forward.3} parent=0 // pred_check_branch
    %117 = sbr.rel (0) target = $region17
  $region16: #{cp_lstm_forward.3} parent=0 // pred_region
    _
  $region17: #{cp_lstm_forward.3} parent=0 // pred_fallthru
    _

// kernel: cp_lstm_forward.5
$region0: #{cp_lstm_forward.5}
  #allocation0 [shape = 'u32[]', space=smem, size = 0x4, offset = 0x4, fixed_abs, tag = 'smem constant byte address 0x4 - core index']
  #allocation1 [shape = 'u32[72,128]{1,0:T(1,128)}', space=vmem, size = 0x9000, scoped, tag = 'internal scratch']
  %s0 = inlined_call_operand.vmem [shape: bf16[64,128], index: 0, kind: input, shape index: {}]
  %s1 = inlined_call_operand.vmem [shape: bf16[128,128], index: 1, kind: input, shape index: {}]
  %s2 = inlined_call_operand.vmem [shape: f32[1,128], index: 2, kind: input, shape index: {}]
  %s3 = inlined_call_operand.hbm [shape: f32[64,128], index: 3, kind: output, shape index: {}]
  %s4 = sld [smem:[#allocation0]]
  $region22: #{cp_lstm_forward.5} parent=0
    _
  %s6 = ssub.s32 1, %s4
  %s7 = scalar_select 0, %s6, %s4
  $region1: #{cp_lstm_forward.5} parent=0
    #allocation2 [shape = 'u8[32768]{0}', space=vmem, size = 0x8000, scoped, tag = 'output window, operand 0, single buffered']
    #allocation3 [shape = 's32[1]{0}', space=sflag, size = 0x4, scoped, tag = 'scoped memory for cp_lstm_forward.5']
    %8 = vsyncpa [#allocation3], 0
    // Predicated region
    $region2: #{cp_lstm_forward.5} parent=1 // pred_check
      _
    $region3: #{cp_lstm_forward.5} parent=1 // pred_check_branch
      %10 = sbr.rel (0) target = $region5
    $region4: #{cp_lstm_forward.5} parent=1 // pred_region
      _
    $region5: #{cp_lstm_forward.5} parent=1 // pred_fallthru
      _
    // Predicated region
    $region6: #{cp_lstm_forward.5} parent=1 // pred_check
      _
    $region7: #{cp_lstm_forward.5} parent=1 // pred_check_branch
      %12 = sbr.rel (0) target = $region9
    $region8: #{cp_lstm_forward.5} parent=1 // pred_region
      _
    $region9: #{cp_lstm_forward.5} parent=1 // pred_fallthru
      _
    // Predicated region
    $region10: #{cp_lstm_forward.5} parent=1 // pred_check
      _
    $region11: #{cp_lstm_forward.5} parent=1 // pred_check_branch
      %14 = sbr.rel (0) target = $region13
    $region12: #{cp_lstm_forward.5} parent=1 // pred_region
      _
    $region13: #{cp_lstm_forward.5} parent=1 // pred_fallthru
      _
    %v15 = vld [vmem:[%s0] sm:$0xf]
    %v16 = vld [vmem:[%s0 + $0x4] sm:$0xf]
    %v17 = vld [vmem:[%s0 + $0x8] sm:$0xf]
    %v18 = vld [vmem:[%s0 + $0xc] sm:$0xf]
    %v19 = vld [vmem:[%s0 + $0x10] sm:$0xf]
    %v20 = vld [vmem:[%s0 + $0x14] sm:$0xf]
    %v21 = vld [vmem:[%s0 + $0x18] sm:$0xf]
    %v22 = vld [vmem:[%s0 + $0x1c] sm:$0xf]
    %v23 = vld [vmem:[%s1] sm:$0xf]
    %v24 = vld [vmem:[%s1 + $0x4] sm:$0xf]
    %v25 = vld [vmem:[%s1 + $0x8] sm:$0xf]
    %v26 = vld [vmem:[%s1 + $0xc] sm:$0xf]
    %v27 = vld [vmem:[%s1 + $0x10] sm:$0xf]
    %v28 = vld [vmem:[%s1 + $0x14] sm:$0xf]
    %v29 = vld [vmem:[%s1 + $0x18] sm:$0xf]
    %v30 = vld [vmem:[%s1 + $0x1c] sm:$0xf]
    %v31 = vld [vmem:[%s1 + $0x20] sm:$0xf]
    %v32 = vld [vmem:[%s1 + $0x24] sm:$0xf]
    %v33 = vld [vmem:[%s1 + $0x28] sm:$0xf]
    %v34 = vld [vmem:[%s1 + $0x2c] sm:$0xf]
    %v35 = vld [vmem:[%s1 + $0x30] sm:$0xf]
    %v36 = vld [vmem:[%s1 + $0x34] sm:$0xf]
    %v37 = vld [vmem:[%s1 + $0x38] sm:$0xf]
    %v38 = vld [vmem:[%s1 + $0x3c] sm:$0xf]
    %v39 = vld [vmem:[%s2] sm:$0x1]
    %v41 = vperm.slane %v39, 0
    %v51 = vunpack.c.l.b16 %v15
    %v52 = vunpack.c.l.b16 %v16
    %v53 = vunpack.c.l.b16 %v17
    %v54 = vunpack.c.l.b16 %v18
    %v55 = vunpack.c.l.b16 %v19
    %v56 = vunpack.c.l.b16 %v20
    %v57 = vunpack.c.l.b16 %v21
    %v58 = vunpack.c.l.b16 %v22
    %v59 = vpack.c.b16 %v52, %v51
    %v60 = vpack.c.b16 %v54, %v53
    %v61 = vpack.c.b16 %v56, %v55
    %v62 = vpack.c.b16 %v58, %v57
    %v83 = vunpack.c.l.b16 %v23
    %v84 = vunpack.c.l.b16 %v24
    %v85 = vunpack.c.l.b16 %v25
    %v86 = vunpack.c.l.b16 %v26
    %v87 = vunpack.c.l.b16 %v27
    %v88 = vunpack.c.l.b16 %v28
    %v89 = vunpack.c.l.b16 %v29
    %v90 = vunpack.c.l.b16 %v30
    %v91 = vunpack.c.l.b16 %v31
    %v92 = vunpack.c.l.b16 %v32
    %v93 = vunpack.c.l.b16 %v33
    %v94 = vunpack.c.l.b16 %v34
    %v95 = vunpack.c.l.b16 %v35
    %v96 = vunpack.c.l.b16 %v36
    %v97 = vunpack.c.l.b16 %v37
    %v98 = vunpack.c.l.b16 %v38
    %v99 = vpack.c.b16 %v84, %v83
    %v100 = vpack.c.b16 %v86, %v85
    %v101 = vpack.c.b16 %v88, %v87
    %v102 = vpack.c.b16 %v90, %v89
    %v103 = vpack.c.b16 %v92, %v91
    %v104 = vpack.c.b16 %v94, %v93
    %v105 = vpack.c.b16 %v96, %v95
    %v106 = vpack.c.b16 %v98, %v97
    %115 = vmatpush.bf16.msra.mxu0 %v106
    %116 = vmatpush.bf16.msra.mxu0 %v105
    %117 = vmatpush.bf16.msra.mxu0 %v104
    %118 = vmatpush.bf16.msra.mxu0 %v103
    %119 = vmatpush.bf16.msra.mxu0 %v102
    %120 = vmatpush.bf16.msra.mxu0 %v101
    %121 = vmatpush.bf16.msra.mxu0 %v100
    %122 = vmatpush.bf16.msra.mxu0 %v99
    %123 = vmatmul.bf16.gmra.mxu0 %v59
    %v124 = vpop.f32.mrf.mxu0
    %v125 = vadd.f32 %v41, %v124
    %v126 = vpop.f32.mrf.mxu0
    %v127 = vadd.f32 %v41, %v126
    %128 = vmatmul.bf16.gmra.mxu0 %v60
    %v129 = vpop.f32.mrf.mxu0
    %v130 = vadd.f32 %v41, %v129
    %v131 = vpop.f32.mrf.mxu0
    %v132 = vadd.f32 %v41, %v131
    %133 = vmatmul.bf16.gmra.mxu0 %v61
    %v134 = vpop.f32.mrf.mxu0
    %v135 = vadd.f32 %v41, %v134
    %v136 = vpop.f32.mrf.mxu0
    %v137 = vadd.f32 %v41, %v136
    %138 = vmatmul.bf16.gmra.mxu0 %v62
    %v139 = vpop.f32.mrf.mxu0
    %v140 = vadd.f32 %v41, %v139
    %v141 = vpop.f32.mrf.mxu0
    %v142 = vadd.f32 %v41, %v141
    %143 = vdwg.mxu0
    %144 = vst [vmem:[#allocation2] sm:$0xff] %v125
    %145 = vst [vmem:[#allocation2 + $0x8] sm:$0xff] %v127
    %146 = vst [vmem:[#allocation2 + $0x10] sm:$0xff] %v130
    %147 = vst [vmem:[#allocation2 + $0x18] sm:$0xff] %v132
    %148 = vst [vmem:[#allocation2 + $0x20] sm:$0xff] %v135
    %149 = vst [vmem:[#allocation2 + $0x28] sm:$0xff] %v137
    %150 = vst [vmem:[#allocation2 + $0x30] sm:$0xff] %v140
    %151 = vst [vmem:[#allocation2 + $0x38] sm:$0xff] %v142
    // Predicated region
    $region14: #{cp_lstm_forward.5} parent=1 // pred_check
      _
    $region15: #{cp_lstm_forward.5} parent=1 // pred_check_branch
      %153 = sbr.rel (0) target = $region17
    $region16: #{cp_lstm_forward.5} parent=1 // pred_region
      %155 = vsyncadd [#allocation3], 0
      %s156 = sshll.u32 [#allocation2], 4
      %s157 = int_to_ptr.vmem [resolvable:$true] %s156
      %s158 = sshll.u32 %s3, 4
      %s159 = int_to_ptr.hbm [resolvable:$true] %s158
      %164 = dma.vmem_to_hbm [thread:$0]  %s157, 1024, %s159, [#allocation3], 128, 128, 8
    $region17: #{cp_lstm_forward.5} parent=1 // pred_fallthru
      _
    // Predicated region
    $region18: #{cp_lstm_forward.5} parent=1 // pred_check
      _
    $region19: #{cp_lstm_forward.5} parent=1 // pred_check_branch
      %166 = sbr.rel (0) target = $region21
    $region20: #{cp_lstm_forward.5} parent=1 // pred_region
      %168 = dma.done [#allocation3], 1024
    $region21: #{cp_lstm_forward.5} parent=1 // pred_fallthru
      _
    %169 = vsyncpa [#allocation3], 1

// kernel: cp_lstm_forward.4
$region0: #{cp_lstm_forward.4}
  #allocation0 [shape = 'u32[]', space=smem, size = 0x4, offset = 0x4, fixed_abs, tag = 'smem constant byte address 0x4 - core index']
  #allocation1 [shape = 'u32[72,128]{1,0:T(1,128)}', space=vmem, size = 0x9000, scoped, tag = 'internal scratch']
  %s0 = inlined_call_operand.vmem [shape: f32[8,8,128], index: 0, kind: input, shape index: {}]
  %s1 = inlined_call_operand.vmem [shape: f32[8,128], index: 1, kind: input, shape index: {}]
  %s2 = inlined_call_operand.vmem [shape: f32[8,128], index: 2, kind: input, shape index: {}]
  %s3 = inlined_call_operand.vmem [shape: bf16[128,128], index: 3, kind: input, shape index: {}]
  %s4 = inlined_call_operand.vmem [shape: f32[128,512], index: 4, kind: input, shape index: {}]
  %s5 = inlined_call_operand.vmem [shape: bf16[8,8,128], index: 5, kind: output, shape index: {0}]
  %s6 = inlined_call_operand.hbm [shape: f32[8,128], index: 6, kind: output, shape index: {1}]
  %s7 = inlined_call_operand.hbm [shape: f32[8,128], index: 7, kind: output, shape index: {2}]
  %8 = xla_tuple %s5, %s6, %s7
  %s9 = sld [smem:[#allocation0]]
  $region50: #{cp_lstm_forward.4} parent=0
    _
  %s11 = ssub.s32 1, %s9
  %s12 = scalar_select 0, %s11, %s9
  $region1: #{cp_lstm_forward.4} parent=0
    #allocation2 [shape = 'u8[4096]{0}', space=vmem, size = 0x1000, scoped, tag = 'output window, operand 1, single buffered']
    #allocation3 [shape = 's32[1]{0}', space=sflag, size = 0x4, scoped, tag = 'scoped memory for cp_lstm_forward.4']
    #allocation4 [shape = 'u8[4096]{0}', space=vmem, size = 0x1000, scoped, tag = 'output window, operand 2, single buffered']
    #allocation5 [shape = 's32[1]{0}', space=sflag, size = 0x4, scoped, tag = 'scoped memory for cp_lstm_forward.4']
    %13 = vsyncpa [#allocation3], 0
    %14 = vsyncpa [#allocation5], 0
    // Predicated region
    $region2: #{cp_lstm_forward.4} parent=1 // pred_check
      _
    $region3: #{cp_lstm_forward.4} parent=1 // pred_check_branch
      %16 = sbr.rel (0) target = $region5
    $region4: #{cp_lstm_forward.4} parent=1 // pred_region
      _
    $region5: #{cp_lstm_forward.4} parent=1 // pred_fallthru
      _
    // Predicated region
    $region6: #{cp_lstm_forward.4} parent=1 // pred_check
      _
    $region7: #{cp_lstm_forward.4} parent=1 // pred_check_branch
      %18 = sbr.rel (0) target = $region9
    $region8: #{cp_lstm_forward.4} parent=1 // pred_region
      _
    $region9: #{cp_lstm_forward.4} parent=1 // pred_fallthru
      _
    // Predicated region
    $region10: #{cp_lstm_forward.4} parent=1 // pred_check
      _
    $region11: #{cp_lstm_forward.4} parent=1 // pred_check_branch
      %20 = sbr.rel (0) target = $region13
    $region12: #{cp_lstm_forward.4} parent=1 // pred_region
      _
    $region13: #{cp_lstm_forward.4} parent=1 // pred_fallthru
      _
    // Predicated region
    $region14: #{cp_lstm_forward.4} parent=1 // pred_check
      _
    $region15: #{cp_lstm_forward.4} parent=1 // pred_check_branch
      %22 = sbr.rel (0) target = $region17
    $region16: #{cp_lstm_forward.4} parent=1 // pred_region
      _
    $region17: #{cp_lstm_forward.4} parent=1 // pred_fallthru
      _
    // Predicated region
    $region18: #{cp_lstm_forward.4} parent=1 // pred_check
      _
    $region19: #{cp_lstm_forward.4} parent=1 // pred_check_branch
      %24 = sbr.rel (0) target = $region21
    $region20: #{cp_lstm_forward.4} parent=1 // pred_region
      _
    $region21: #{cp_lstm_forward.4} parent=1 // pred_fallthru
      _
    %p25 = scmp.eq.s32.totalorder 0, 0
    // Predicated region
    $region22: #{cp_lstm_forward.4} parent=1 // pred_check
      %p26 = pneg %p25
    $region23: #{cp_lstm_forward.4} parent=1 // pred_check_branch
      %28 = sbr.rel (%p26) target = $region25
    $region24: #{cp_lstm_forward.4} parent=1 // pred_region
      %v29 = vld [vmem:[%s1] sm:$0xff]
      %30 = vst [vmem:[#allocation2] sm:$0xff] %v29
      %v31 = vld [vmem:[%s2] sm:$0xff]
      %32 = vst [vmem:[#allocation4] sm:$0xff] %v31
    $region25: #{cp_lstm_forward.4} parent=1 // pred_fallthru
      _
    %v33 = vld [vmem:[%s3] sm:$0xf]
    %v34 = vld [vmem:[%s3 + $0x4] sm:$0xf]
    %v35 = vld [vmem:[%s3 + $0x8] sm:$0xf]
    %v36 = vld [vmem:[%s3 + $0xc] sm:$0xf]
    %v37 = vld [vmem:[%s3 + $0x10] sm:$0xf]
    %v38 = vld [vmem:[%s3 + $0x14] sm:$0xf]
    %v39 = vld [vmem:[%s3 + $0x18] sm:$0xf]
    %v40 = vld [vmem:[%s3 + $0x1c] sm:$0xf]
    %v41 = vld [vmem:[%s3 + $0x20] sm:$0xf]
    %v42 = vld [vmem:[%s3 + $0x24] sm:$0xf]
    %v43 = vld [vmem:[%s3 + $0x28] sm:$0xf]
    %v44 = vld [vmem:[%s3 + $0x2c] sm:$0xf]
    %v45 = vld [vmem:[%s3 + $0x30] sm:$0xf]
    %v46 = vld [vmem:[%s3 + $0x34] sm:$0xf]
    %v47 = vld [vmem:[%s3 + $0x38] sm:$0xf]
    %v48 = vld [vmem:[%s3 + $0x3c] sm:$0xf]
    %v49 = vld [vmem:[%s4] sm:$0xff]
    %v50 = vld [vmem:[%s4 + $0x8] sm:$0xff]
    %v51 = vld [vmem:[%s4 + $0x10] sm:$0xff]
    %v52 = vld [vmem:[%s4 + $0x18] sm:$0xff]
    %v53 = vld [vmem:[%s4 + $0x20] sm:$0xff]
    %v54 = vld [vmem:[%s4 + $0x28] sm:$0xff]
    %v55 = vld [vmem:[%s4 + $0x30] sm:$0xff]
    %v56 = vld [vmem:[%s4 + $0x38] sm:$0xff]
    %v57 = vld [vmem:[%s4 + $0x40] sm:$0xff]
    %v58 = vld [vmem:[%s4 + $0x48] sm:$0xff]
    %v59 = vld [vmem:[%s4 + $0x50] sm:$0xff]
    %v60 = vld [vmem:[%s4 + $0x58] sm:$0xff]
    %v61 = vld [vmem:[%s4 + $0x60] sm:$0xff]
    %v62 = vld [vmem:[%s4 + $0x68] sm:$0xff]
    %v63 = vld [vmem:[%s4 + $0x70] sm:$0xff]
    %v64 = vld [vmem:[%s4 + $0x78] sm:$0xff]
    %v65 = vld [vmem:[%s4 + $0x80] sm:$0xff]
    %v66 = vld [vmem:[%s4 + $0x88] sm:$0xff]
    %v67 = vld [vmem:[%s4 + $0x90] sm:$0xff]
    %v68 = vld [vmem:[%s4 + $0x98] sm:$0xff]
    %v69 = vld [vmem:[%s4 + $0xa0] sm:$0xff]
    %v70 = vld [vmem:[%s4 + $0xa8] sm:$0xff]
    %v71 = vld [vmem:[%s4 + $0xb0] sm:$0xff]
    %v72 = vld [vmem:[%s4 + $0xb8] sm:$0xff]
    %v73 = vld [vmem:[%s4 + $0xc0] sm:$0xff]
    %v74 = vld [vmem:[%s4 + $0xc8] sm:$0xff]
    %v75 = vld [vmem:[%s4 + $0xd0] sm:$0xff]
    %v76 = vld [vmem:[%s4 + $0xd8] sm:$0xff]
    %v77 = vld [vmem:[%s4 + $0xe0] sm:$0xff]
    %v78 = vld [vmem:[%s4 + $0xe8] sm:$0xff]
    %v79 = vld [vmem:[%s4 + $0xf0] sm:$0xff]
    %v80 = vld [vmem:[%s4 + $0xf8] sm:$0xff]
    %v81 = vld [vmem:[%s4 + $0x100] sm:$0xff]
    %v82 = vld [vmem:[%s4 + $0x108] sm:$0xff]
    %v83 = vld [vmem:[%s4 + $0x110] sm:$0xff]
    %v84 = vld [vmem:[%s4 + $0x118] sm:$0xff]
    %v85 = vld [vmem:[%s4 + $0x120] sm:$0xff]
    %v86 = vld [vmem:[%s4 + $0x128] sm:$0xff]
    %v87 = vld [vmem:[%s4 + $0x130] sm:$0xff]
    %v88 = vld [vmem:[%s4 + $0x138] sm:$0xff]
    %v89 = vld [vmem:[%s4 + $0x140] sm:$0xff]
    %v90 = vld [vmem:[%s4 + $0x148] sm:$0xff]
    %v91 = vld [vmem:[%s4 + $0x150] sm:$0xff]
    %v92 = vld [vmem:[%s4 + $0x158] sm:$0xff]
    %v93 = vld [vmem:[%s4 + $0x160] sm:$0xff]
    %v94 = vld [vmem:[%s4 + $0x168] sm:$0xff]
    %v95 = vld [vmem:[%s4 + $0x170] sm:$0xff]
    %v96 = vld [vmem:[%s4 + $0x178] sm:$0xff]
    %v97 = vld [vmem:[%s4 + $0x180] sm:$0xff]
    %v98 = vld [vmem:[%s4 + $0x188] sm:$0xff]
    %v99 = vld [vmem:[%s4 + $0x190] sm:$0xff]
    %v100 = vld [vmem:[%s4 + $0x198] sm:$0xff]
    %v101 = vld [vmem:[%s4 + $0x1a0] sm:$0xff]
    %v102 = vld [vmem:[%s4 + $0x1a8] sm:$0xff]
    %v103 = vld [vmem:[%s4 + $0x1b0] sm:$0xff]
    %v104 = vld [vmem:[%s4 + $0x1b8] sm:$0xff]
    %v105 = vld [vmem:[%s4 + $0x1c0] sm:$0xff]
    %v106 = vld [vmem:[%s4 + $0x1c8] sm:$0xff]
    %v107 = vld [vmem:[%s4 + $0x1d0] sm:$0xff]
    %v108 = vld [vmem:[%s4 + $0x1d8] sm:$0xff]
    %v109 = vld [vmem:[%s4 + $0x1e0] sm:$0xff]
    %v110 = vld [vmem:[%s4 + $0x1e8] sm:$0xff]
    %v111 = vld [vmem:[%s4 + $0x1f0] sm:$0xff]
    %v112 = vld [vmem:[%s4 + $0x1f8] sm:$0xff]
    %v113 = vld [vmem:[#allocation2] sm:$0xff]
    %v114 = vld [vmem:[#allocation4] sm:$0xff]
    %v115 = vld [vmem:[%s0] sm:$0xff]
    %v116 = vpack.c.bf16 %v113, %v113
    %v133 = vunpack.c.l.b16 %v33
    %v134 = vunpack.c.l.b16 %v34
    %v135 = vunpack.c.l.b16 %v35
    %v136 = vunpack.c.l.b16 %v36
    %v137 = vunpack.c.l.b16 %v37
    %v138 = vunpack.c.l.b16 %v38
    %v139 = vunpack.c.l.b16 %v39
    %v140 = vunpack.c.l.b16 %v40
    %v141 = vunpack.c.l.b16 %v41
    %v142 = vunpack.c.l.b16 %v42
    %v143 = vunpack.c.l.b16 %v43
    %v144 = vunpack.c.l.b16 %v44
    %v145 = vunpack.c.l.b16 %v45
    %v146 = vunpack.c.l.b16 %v46
    %v147 = vunpack.c.l.b16 %v47
    %v148 = vunpack.c.l.b16 %v48
    %v149 = vpack.c.b16 %v134, %v133
    %v150 = vpack.c.b16 %v136, %v135
    %v151 = vpack.c.b16 %v138, %v137
    %v152 = vpack.c.b16 %v140, %v139
    %v153 = vpack.c.b16 %v142, %v141
    %v154 = vpack.c.b16 %v144, %v143
    %v155 = vpack.c.b16 %v146, %v145
    %v156 = vpack.c.b16 %v148, %v147
    %165 = vmatpush.bf16.msra.mxu0 %v156
    %166 = vmatpush.bf16.msra.mxu0 %v155
    %167 = vmatpush.bf16.msra.mxu0 %v154
    %168 = vmatpush.bf16.msra.mxu0 %v153
    %169 = vmatpush.bf16.msra.mxu0 %v152
    %170 = vmatpush.bf16.msra.mxu0 %v151
    %171 = vmatpush.bf16.msra.mxu0 %v150
    %172 = vmatpush.bf16.msra.mxu0 %v149
    %173 = vmatmul.bf16.gmra.mxu0 %v116
    %v174 = vpop.f32.mrf.mxu0
    %v175 = vadd.f32 0.0, %v174
    %v176 = vpop.f32.mrf.mxu0
    %177 = vdwg.mxu0
    %v178 = vmul.f32 %v175, %v115
    %179 = vmatpush.msra.mxu0 %v109
    %180 = vmatpush.msra.mxu0 %v105
    %181 = vmatpush.msra.mxu0 %v101
    %182 = vmatpush.msra.mxu0 %v97
    %183 = vmatpush.msra.mxu0 %v93
    %184 = vmatpush.msra.mxu0 %v89
    %185 = vmatpush.msra.mxu0 %v85
    %186 = vmatpush.msra.mxu0 %v81
    %187 = vmatpush.msra.mxu0 %v77
    %188 = vmatpush.msra.mxu0 %v73
    %189 = vmatpush.msra.mxu0 %v69
    %190 = vmatpush.msra.mxu0 %v65
    %191 = vmatpush.msra.mxu0 %v61
    %192 = vmatpush.msra.mxu0 %v57
    %193 = vmatpush.msra.mxu0 %v53
    %194 = vmatpush.msra.mxu0 %v49
    %195 = vmatmul.f32.gmra.mxu0 %v178
    %v196 = vpop.f32.mrf.mxu0
    %v197 = vadd.f32 0.0, %v196
    %198 = vdwg.mxu0
    %199 = vmatpush.msra.mxu0 %v110
    %200 = vmatpush.msra.mxu0 %v106
    %201 = vmatpush.msra.mxu0 %v102
    %202 = vmatpush.msra.mxu0 %v98
    %203 = vmatpush.msra.mxu0 %v94
    %204 = vmatpush.msra.mxu0 %v90
    %205 = vmatpush.msra.mxu0 %v86
    %206 = vmatpush.msra.mxu0 %v82
    %207 = vmatpush.msra.mxu0 %v78
    %208 = vmatpush.msra.mxu0 %v74
    %209 = vmatpush.msra.mxu0 %v70
    %210 = vmatpush.msra.mxu0 %v66
    %211 = vmatpush.msra.mxu0 %v62
    %212 = vmatpush.msra.mxu0 %v58
    %213 = vmatpush.msra.mxu0 %v54
    %214 = vmatpush.msra.mxu0 %v50
    %215 = vmatmul.f32.gmra.mxu0 %v178
    %v216 = vpop.f32.mrf.mxu0
    %v217 = vadd.f32 0.0, %v216
    %218 = vdwg.mxu0
    %219 = vmatpush.msra.mxu0 %v111
    %220 = vmatpush.msra.mxu0 %v107
    %221 = vmatpush.msra.mxu0 %v103
    %222 = vmatpush.msra.mxu0 %v99
    %223 = vmatpush.msra.mxu0 %v95
    %224 = vmatpush.msra.mxu0 %v91
    %225 = vmatpush.msra.mxu0 %v87
    %226 = vmatpush.msra.mxu0 %v83
    %227 = vmatpush.msra.mxu0 %v79
    %228 = vmatpush.msra.mxu0 %v75
    %229 = vmatpush.msra.mxu0 %v71
    %230 = vmatpush.msra.mxu0 %v67
    %231 = vmatpush.msra.mxu0 %v63
    %232 = vmatpush.msra.mxu0 %v59
    %233 = vmatpush.msra.mxu0 %v55
    %234 = vmatpush.msra.mxu0 %v51
    %235 = vmatmul.f32.gmra.mxu0 %v178
    %v236 = vpop.f32.mrf.mxu0
    %v237 = vadd.f32 0.0, %v236
    %238 = vdwg.mxu0
    %239 = vmatpush.msra.mxu0 %v112
    %240 = vmatpush.msra.mxu0 %v108
    %241 = vmatpush.msra.mxu0 %v104
    %242 = vmatpush.msra.mxu0 %v100
    %243 = vmatpush.msra.mxu0 %v96
    %244 = vmatpush.msra.mxu0 %v92
    %245 = vmatpush.msra.mxu0 %v88
    %246 = vmatpush.msra.mxu0 %v84
    %247 = vmatpush.msra.mxu0 %v80
    %248 = vmatpush.msra.mxu0 %v76
    %249 = vmatpush.msra.mxu0 %v72
    %250 = vmatpush.msra.mxu0 %v68
    %251 = vmatpush.msra.mxu0 %v64
    %252 = vmatpush.msra.mxu0 %v60
    %253 = vmatpush.msra.mxu0 %v56
    %254 = vmatpush.msra.mxu0 %v52
    %255 = vmatmul.f32.gmra.mxu0 %v178
    %v256 = vpop.f32.mrf.mxu0
    %v257 = vadd.f32 0.0, %v256
    %258 = vdwg.mxu0
    %v259 = vmul.f32 %v197, 0.5
    %v260 = vtanh.pop %v259
    %v261 = vmul.f32 %v260, 0.5
    %v262 = vadd.f32 %v261, 0.5
    %v263 = vmul.f32 %v217, 0.5
    %v264 = vtanh.pop %v263
    %v265 = vmul.f32 %v264, 0.5
    %v266 = vadd.f32 %v265, 0.5
    %v267 = vtanh.pop %v237
    %v268 = vmul.f32 %v257, 0.5
    %v269 = vtanh.pop %v268
    %v270 = vmul.f32 %v269, 0.5
    %v271 = vadd.f32 %v270, 0.5
    %v272 = vmul.f32 %v262, %v114
    %v273 = vmul.f32 %v266, %v267
    %v274 = vadd.f32 %v272, %v273
    %v275 = vtanh.pop %v274
    %v276 = vmul.f32 %v271, %v275
    %v277 = vpack.c.bf16 %v276, %v276
    %278 = vst [vmem:[%s5] sm:$0xf] %v277
    %s279 = scalar_lea.vmem %s0, 8
    %v280 = vld [vmem:[%s279] sm:$0xff]
    %281 = vmatpush.bf16.msra.mxu0 %v156
    %282 = vmatpush.bf16.msra.mxu0 %v155
    %283 = vmatpush.bf16.msra.mxu0 %v154
    %284 = vmatpush.bf16.msra.mxu0 %v153
    %285 = vmatpush.bf16.msra.mxu0 %v152
    %286 = vmatpush.bf16.msra.mxu0 %v151
    %287 = vmatpush.bf16.msra.mxu0 %v150
    %288 = vmatpush.bf16.msra.mxu0 %v149
    %289 = vmatmul.bf16.gmra.mxu0 %v277
    %v290 = vpop.f32.mrf.mxu0
    %v291 = vadd.f32 0.0, %v290
    %v292 = vpop.f32.mrf.mxu0
    %293 = vdwg.mxu0
    %v294 = vmul.f32 %v291, %v280
    %295 = vmatpush.msra.mxu0 %v109
    %296 = vmatpush.msra.mxu0 %v105
    %297 = vmatpush.msra.mxu0 %v101
    %298 = vmatpush.msra.mxu0 %v97
    %299 = vmatpush.msra.mxu0 %v93
    %300 = vmatpush.msra.mxu0 %v89
    %301 = vmatpush.msra.mxu0 %v85
    %302 = vmatpush.msra.mxu0 %v81
    %303 = vmatpush.msra.mxu0 %v77
    %304 = vmatpush.msra.mxu0 %v73
    %305 = vmatpush.msra.mxu0 %v69
    %306 = vmatpush.msra.mxu0 %v65
    %307 = vmatpush.msra.mxu0 %v61
    %308 = vmatpush.msra.mxu0 %v57
    %309 = vmatpush.msra.mxu0 %v53
    %310 = vmatpush.msra.mxu0 %v49
    %311 = vmatmul.f32.gmra.mxu0 %v294
    %v312 = vpop.f32.mrf.mxu0
    %v313 = vadd.f32 0.0, %v312
    %314 = vdwg.mxu0
    %315 = vmatpush.msra.mxu0 %v110
    %316 = vmatpush.msra.mxu0 %v106
    %317 = vmatpush.msra.mxu0 %v102
    %318 = vmatpush.msra.mxu0 %v98
    %319 = vmatpush.msra.mxu0 %v94
    %320 = vmatpush.msra.mxu0 %v90
    %321 = vmatpush.msra.mxu0 %v86
    %322 = vmatpush.msra.mxu0 %v82
    %323 = vmatpush.msra.mxu0 %v78
    %324 = vmatpush.msra.mxu0 %v74
    %325 = vmatpush.msra.mxu0 %v70
    %326 = vmatpush.msra.mxu0 %v66
    %327 = vmatpush.msra.mxu0 %v62
    %328 = vmatpush.msra.mxu0 %v58
    %329 = vmatpush.msra.mxu0 %v54
    %330 = vmatpush.msra.mxu0 %v50
    %331 = vmatmul.f32.gmra.mxu0 %v294
    %v332 = vpop.f32.mrf.mxu0
    %v333 = vadd.f32 0.0, %v332
    %334 = vdwg.mxu0
    %335 = vmatpush.msra.mxu0 %v111
    %336 = vmatpush.msra.mxu0 %v107
    %337 = vmatpush.msra.mxu0 %v103
    %338 = vmatpush.msra.mxu0 %v99
    %339 = vmatpush.msra.mxu0 %v95
    %340 = vmatpush.msra.mxu0 %v91
    %341 = vmatpush.msra.mxu0 %v87
    %342 = vmatpush.msra.mxu0 %v83
    %343 = vmatpush.msra.mxu0 %v79
    %344 = vmatpush.msra.mxu0 %v75
    %345 = vmatpush.msra.mxu0 %v71
    %346 = vmatpush.msra.mxu0 %v67
    %347 = vmatpush.msra.mxu0 %v63
    %348 = vmatpush.msra.mxu0 %v59
    %349 = vmatpush.msra.mxu0 %v55
    %350 = vmatpush.msra.mxu0 %v51
    %351 = vmatmul.f32.gmra.mxu0 %v294
    %v352 = vpop.f32.mrf.mxu0
    %v353 = vadd.f32 0.0, %v352
    %354 = vdwg.mxu0
    %355 = vmatpush.msra.mxu0 %v112
    %356 = vmatpush.msra.mxu0 %v108
    %357 = vmatpush.msra.mxu0 %v104
    %358 = vmatpush.msra.mxu0 %v100
    %359 = vmatpush.msra.mxu0 %v96
    %360 = vmatpush.msra.mxu0 %v92
    %361 = vmatpush.msra.mxu0 %v88
    %362 = vmatpush.msra.mxu0 %v84
    %363 = vmatpush.msra.mxu0 %v80
    %364 = vmatpush.msra.mxu0 %v76
    %365 = vmatpush.msra.mxu0 %v72
    %366 = vmatpush.msra.mxu0 %v68
    %367 = vmatpush.msra.mxu0 %v64
    %368 = vmatpush.msra.mxu0 %v60
    %369 = vmatpush.msra.mxu0 %v56
    %370 = vmatpush.msra.mxu0 %v52
    %371 = vmatmul.f32.gmra.mxu0 %v294
    %v372 = vpop.f32.mrf.mxu0
    %v373 = vadd.f32 0.0, %v372
    %374 = vdwg.mxu0
    %v375 = vmul.f32 %v313, 0.5
    %v376 = vtanh.pop %v375
    %v377 = vmul.f32 %v376, 0.5
    %v378 = vadd.f32 %v377, 0.5
    %v379 = vmul.f32 %v333, 0.5
    %v380 = vtanh.pop %v379
    %v381 = vmul.f32 %v380, 0.5
    %v382 = vadd.f32 %v381, 0.5
    %v383 = vtanh.pop %v353
    %v384 = vmul.f32 %v373, 0.5
    %v385 = vtanh.pop %v384
    %v386 = vmul.f32 %v385, 0.5
    %v387 = vadd.f32 %v386, 0.5
    %v388 = vmul.f32 %v378, %v274
    %v389 = vmul.f32 %v382, %v383
    %v390 = vadd.f32 %v388, %v389
    %v391 = vtanh.pop %v390
    %v392 = vmul.f32 %v387, %v391
    %v393 = vpack.c.bf16 %v392, %v392
    %s394 = scalar_lea.vmem %s5, 4
    %395 = vst [vmem:[%s394] sm:$0xf] %v393
    %s396 = scalar_lea.vmem %s0, 16
    %v397 = vld [vmem:[%s396] sm:$0xff]
    %398 = vmatpush.bf16.msra.mxu0 %v156
    %399 = vmatpush.bf16.msra.mxu0 %v155
    %400 = vmatpush.bf16.msra.mxu0 %v154
    %401 = vmatpush.bf16.msra.mxu0 %v153
    %402 = vmatpush.bf16.msra.mxu0 %v152
    %403 = vmatpush.bf16.msra.mxu0 %v151
    %404 = vmatpush.bf16.msra.mxu0 %v150
    %405 = vmatpush.bf16.msra.mxu0 %v149
    %406 = vmatmul.bf16.gmra.mxu0 %v393
    %v407 = vpop.f32.mrf.mxu0
    %v408 = vadd.f32 0.0, %v407
    %v409 = vpop.f32.mrf.mxu0
    %410 = vdwg.mxu0
    %v411 = vmul.f32 %v408, %v397
    %412 = vmatpush.msra.mxu0 %v109
    %413 = vmatpush.msra.mxu0 %v105
    %414 = vmatpush.msra.mxu0 %v101
    %415 = vmatpush.msra.mxu0 %v97
    %416 = vmatpush.msra.mxu0 %v93
    %417 = vmatpush.msra.mxu0 %v89
    %418 = vmatpush.msra.mxu0 %v85
    %419 = vmatpush.msra.mxu0 %v81
    %420 = vmatpush.msra.mxu0 %v77
    %421 = vmatpush.msra.mxu0 %v73
    %422 = vmatpush.msra.mxu0 %v69
    %423 = vmatpush.msra.mxu0 %v65
    %424 = vmatpush.msra.mxu0 %v61
    %425 = vmatpush.msra.mxu0 %v57
    %426 = vmatpush.msra.mxu0 %v53
    %427 = vmatpush.msra.mxu0 %v49
    %428 = vmatmul.f32.gmra.mxu0 %v411
    %v429 = vpop.f32.mrf.mxu0
    %v430 = vadd.f32 0.0, %v429
    %431 = vdwg.mxu0
    %432 = vmatpush.msra.mxu0 %v110
    %433 = vmatpush.msra.mxu0 %v106
    %434 = vmatpush.msra.mxu0 %v102
    %435 = vmatpush.msra.mxu0 %v98
    %436 = vmatpush.msra.mxu0 %v94
    %437 = vmatpush.msra.mxu0 %v90
    %438 = vmatpush.msra.mxu0 %v86
    %439 = vmatpush.msra.mxu0 %v82
    %440 = vmatpush.msra.mxu0 %v78
    %441 = vmatpush.msra.mxu0 %v74
    %442 = vmatpush.msra.mxu0 %v70
    %443 = vmatpush.msra.mxu0 %v66
    %444 = vmatpush.msra.mxu0 %v62
    %445 = vmatpush.msra.mxu0 %v58
    %446 = vmatpush.msra.mxu0 %v54
    %447 = vmatpush.msra.mxu0 %v50
    %448 = vmatmul.f32.gmra.mxu0 %v411
    %v449 = vpop.f32.mrf.mxu0
    %v450 = vadd.f32 0.0, %v449
    %451 = vdwg.mxu0
    %452 = vmatpush.msra.mxu0 %v111
    %453 = vmatpush.msra.mxu0 %v107
    %454 = vmatpush.msra.mxu0 %v103
    %455 = vmatpush.msra.mxu0 %v99
    %456 = vmatpush.msra.mxu0 %v95
    %457 = vmatpush.msra.mxu0 %v91
    %458 = vmatpush.msra.mxu0 %v87
    %459 = vmatpush.msra.mxu0 %v83
    %460 = vmatpush.msra.mxu0 %v79
    %461 = vmatpush.msra.mxu0 %v75
    %462 = vmatpush.msra.mxu0 %v71
    %463 = vmatpush.msra.mxu0 %v67
    %464 = vmatpush.msra.mxu0 %v63
    %465 = vmatpush.msra.mxu0 %v59
    %466 = vmatpush.msra.mxu0 %v55
    %467 = vmatpush.msra.mxu0 %v51
    %468 = vmatmul.f32.gmra.mxu0 %v411
    %v469 = vpop.f32.mrf.mxu0
    %v470 = vadd.f32 0.0, %v469
    %471 = vdwg.mxu0
    %472 = vmatpush.msra.mxu0 %v112
    %473 = vmatpush.msra.mxu0 %v108
    %474 = vmatpush.msra.mxu0 %v104
    %475 = vmatpush.msra.mxu0 %v100
    %476 = vmatpush.msra.mxu0 %v96
    %477 = vmatpush.msra.mxu0 %v92
    %478 = vmatpush.msra.mxu0 %v88
    %479 = vmatpush.msra.mxu0 %v84
    %480 = vmatpush.msra.mxu0 %v80
    %481 = vmatpush.msra.mxu0 %v76
    %482 = vmatpush.msra.mxu0 %v72
    %483 = vmatpush.msra.mxu0 %v68
    %484 = vmatpush.msra.mxu0 %v64
    %485 = vmatpush.msra.mxu0 %v60
    %486 = vmatpush.msra.mxu0 %v56
    %487 = vmatpush.msra.mxu0 %v52
    %488 = vmatmul.f32.gmra.mxu0 %v411
    %v489 = vpop.f32.mrf.mxu0
    %v490 = vadd.f32 0.0, %v489
    %491 = vdwg.mxu0
    %v492 = vmul.f32 %v430, 0.5
    %v493 = vtanh.pop %v492
    %v494 = vmul.f32 %v493, 0.5
    %v495 = vadd.f32 %v494, 0.5
    %v496 = vmul.f32 %v450, 0.5
    %v497 = vtanh.pop %v496
    %v498 = vmul.f32 %v497, 0.5
    %v499 = vadd.f32 %v498, 0.5
    %v500 = vtanh.pop %v470
    %v501 = vmul.f32 %v490, 0.5
    %v502 = vtanh.pop %v501
    %v503 = vmul.f32 %v502, 0.5
    %v504 = vadd.f32 %v503, 0.5
    %v505 = vmul.f32 %v495, %v390
    %v506 = vmul.f32 %v499, %v500
    %v507 = vadd.f32 %v505, %v506
    %v508 = vtanh.pop %v507
    %v509 = vmul.f32 %v504, %v508
    %v510 = vpack.c.bf16 %v509, %v509
    %s511 = scalar_lea.vmem %s5, 8
    %512 = vst [vmem:[%s511] sm:$0xf] %v510
    %s513 = scalar_lea.vmem %s0, 24
    %v514 = vld [vmem:[%s513] sm:$0xff]
    %515 = vmatpush.bf16.msra.mxu0 %v156
    %516 = vmatpush.bf16.msra.mxu0 %v155
    %517 = vmatpush.bf16.msra.mxu0 %v154
    %518 = vmatpush.bf16.msra.mxu0 %v153
    %519 = vmatpush.bf16.msra.mxu0 %v152
    %520 = vmatpush.bf16.msra.mxu0 %v151
    %521 = vmatpush.bf16.msra.mxu0 %v150
    %522 = vmatpush.bf16.msra.mxu0 %v149
    %523 = vmatmul.bf16.gmra.mxu0 %v510
    %v524 = vpop.f32.mrf.mxu0
    %v525 = vadd.f32 0.0, %v524
    %v526 = vpop.f32.mrf.mxu0
    %527 = vdwg.mxu0
    %v528 = vmul.f32 %v525, %v514
    %529 = vmatpush.msra.mxu0 %v109
    %530 = vmatpush.msra.mxu0 %v105
    %531 = vmatpush.msra.mxu0 %v101
    %532 = vmatpush.msra.mxu0 %v97
    %533 = vmatpush.msra.mxu0 %v93
    %534 = vmatpush.msra.mxu0 %v89
    %535 = vmatpush.msra.mxu0 %v85
    %536 = vmatpush.msra.mxu0 %v81
    %537 = vmatpush.msra.mxu0 %v77
    %538 = vmatpush.msra.mxu0 %v73
    %539 = vmatpush.msra.mxu0 %v69
    %540 = vmatpush.msra.mxu0 %v65
    %541 = vmatpush.msra.mxu0 %v61
    %542 = vmatpush.msra.mxu0 %v57
    %543 = vmatpush.msra.mxu0 %v53
    %544 = vmatpush.msra.mxu0 %v49
    %545 = vmatmul.f32.gmra.mxu0 %v528
    %v546 = vpop.f32.mrf.mxu0
    %v547 = vadd.f32 0.0, %v546
    %548 = vdwg.mxu0
    %549 = vmatpush.msra.mxu0 %v110
    %550 = vmatpush.msra.mxu0 %v106
    %551 = vmatpush.msra.mxu0 %v102
    %552 = vmatpush.msra.mxu0 %v98
    %553 = vmatpush.msra.mxu0 %v94
    %554 = vmatpush.msra.mxu0 %v90
    %555 = vmatpush.msra.mxu0 %v86
    %556 = vmatpush.msra.mxu0 %v82
    %557 = vmatpush.msra.mxu0 %v78
    %558 = vmatpush.msra.mxu0 %v74
    %559 = vmatpush.msra.mxu0 %v70
    %560 = vmatpush.msra.mxu0 %v66
    %561 = vmatpush.msra.mxu0 %v62
    %562 = vmatpush.msra.mxu0 %v58
    %563 = vmatpush.msra.mxu0 %v54
    %564 = vmatpush.msra.mxu0 %v50
    %565 = vmatmul.f32.gmra.mxu0 %v528
    %v566 = vpop.f32.mrf.mxu0
    %v567 = vadd.f32 0.0, %v566
    %568 = vdwg.mxu0
    %569 = vmatpush.msra.mxu0 %v111
    %570 = vmatpush.msra.mxu0 %v107
    %571 = vmatpush.msra.mxu0 %v103
    %572 = vmatpush.msra.mxu0 %v99
    %573 = vmatpush.msra.mxu0 %v95
    %574 = vmatpush.msra.mxu0 %v91
    %575 = vmatpush.msra.mxu0 %v87
    %576 = vmatpush.msra.mxu0 %v83
    %577 = vmatpush.msra.mxu0 %v79
    %578 = vmatpush.msra.mxu0 %v75
    %579 = vmatpush.msra.mxu0 %v71
    %580 = vmatpush.msra.mxu0 %v67
    %581 = vmatpush.msra.mxu0 %v63
    %582 = vmatpush.msra.mxu0 %v59
    %583 = vmatpush.msra.mxu0 %v55
    %584 = vmatpush.msra.mxu0 %v51
    %585 = vmatmul.f32.gmra.mxu0 %v528
    %v586 = vpop.f32.mrf.mxu0
    %v587 = vadd.f32 0.0, %v586
    %588 = vdwg.mxu0
    %589 = vmatpush.msra.mxu0 %v112
    %590 = vmatpush.msra.mxu0 %v108
    %591 = vmatpush.msra.mxu0 %v104
    %592 = vmatpush.msra.mxu0 %v100
    %593 = vmatpush.msra.mxu0 %v96
    %594 = vmatpush.msra.mxu0 %v92
    %595 = vmatpush.msra.mxu0 %v88
    %596 = vmatpush.msra.mxu0 %v84
    %597 = vmatpush.msra.mxu0 %v80
    %598 = vmatpush.msra.mxu0 %v76
    %599 = vmatpush.msra.mxu0 %v72
    %600 = vmatpush.msra.mxu0 %v68
    %601 = vmatpush.msra.mxu0 %v64
    %602 = vmatpush.msra.mxu0 %v60
    %603 = vmatpush.msra.mxu0 %v56
    %604 = vmatpush.msra.mxu0 %v52
    %605 = vmatmul.f32.gmra.mxu0 %v528
    %v606 = vpop.f32.mrf.mxu0
    %v607 = vadd.f32 0.0, %v606
    %608 = vdwg.mxu0
    %v609 = vmul.f32 %v547, 0.5
    %v610 = vtanh.pop %v609
    %v611 = vmul.f32 %v610, 0.5
    %v612 = vadd.f32 %v611, 0.5
    %v613 = vmul.f32 %v567, 0.5
    %v614 = vtanh.pop %v613
    %v615 = vmul.f32 %v614, 0.5
    %v616 = vadd.f32 %v615, 0.5
    %v617 = vtanh.pop %v587
    %v618 = vmul.f32 %v607, 0.5
    %v619 = vtanh.pop %v618
    %v620 = vmul.f32 %v619, 0.5
    %v621 = vadd.f32 %v620, 0.5
    %v622 = vmul.f32 %v612, %v507
    %v623 = vmul.f32 %v616, %v617
    %v624 = vadd.f32 %v622, %v623
    %v625 = vtanh.pop %v624
    %v626 = vmul.f32 %v621, %v625
    %v627 = vpack.c.bf16 %v626, %v626
    %s628 = scalar_lea.vmem %s5, 12
    %629 = vst [vmem:[%s628] sm:$0xf] %v627
    %s630 = scalar_lea.vmem %s0, 32
    %v631 = vld [vmem:[%s630] sm:$0xff]
    %632 = vmatpush.bf16.msra.mxu0 %v156
    %633 = vmatpush.bf16.msra.mxu0 %v155
    %634 = vmatpush.bf16.msra.mxu0 %v154
    %635 = vmatpush.bf16.msra.mxu0 %v153
    %636 = vmatpush.bf16.msra.mxu0 %v152
    %637 = vmatpush.bf16.msra.mxu0 %v151
    %638 = vmatpush.bf16.msra.mxu0 %v150
    %639 = vmatpush.bf16.msra.mxu0 %v149
    %640 = vmatmul.bf16.gmra.mxu0 %v627
    %v641 = vpop.f32.mrf.mxu0
    %v642 = vadd.f32 0.0, %v641
    %v643 = vpop.f32.mrf.mxu0
    %644 = vdwg.mxu0
    %v645 = vmul.f32 %v642, %v631
    %646 = vmatpush.msra.mxu0 %v109
    %647 = vmatpush.msra.mxu0 %v105
    %648 = vmatpush.msra.mxu0 %v101
    %649 = vmatpush.msra.mxu0 %v97
    %650 = vmatpush.msra.mxu0 %v93
    %651 = vmatpush.msra.mxu0 %v89
    %652 = vmatpush.msra.mxu0 %v85
    %653 = vmatpush.msra.mxu0 %v81
    %654 = vmatpush.msra.mxu0 %v77
    %655 = vmatpush.msra.mxu0 %v73
    %656 = vmatpush.msra.mxu0 %v69
    %657 = vmatpush.msra.mxu0 %v65
    %658 = vmatpush.msra.mxu0 %v61
    %659 = vmatpush.msra.mxu0 %v57
    %660 = vmatpush.msra.mxu0 %v53
    %661 = vmatpush.msra.mxu0 %v49
    %662 = vmatmul.f32.gmra.mxu0 %v645
    %v663 = vpop.f32.mrf.mxu0
    %v664 = vadd.f32 0.0, %v663
    %665 = vdwg.mxu0
    %666 = vmatpush.msra.mxu0 %v110
    %667 = vmatpush.msra.mxu0 %v106
    %668 = vmatpush.msra.mxu0 %v102
    %669 = vmatpush.msra.mxu0 %v98
    %670 = vmatpush.msra.mxu0 %v94
    %671 = vmatpush.msra.mxu0 %v90
    %672 = vmatpush.msra.mxu0 %v86
    %673 = vmatpush.msra.mxu0 %v82
    %674 = vmatpush.msra.mxu0 %v78
    %675 = vmatpush.msra.mxu0 %v74
    %676 = vmatpush.msra.mxu0 %v70
    %677 = vmatpush.msra.mxu0 %v66
    %678 = vmatpush.msra.mxu0 %v62
    %679 = vmatpush.msra.mxu0 %v58
    %680 = vmatpush.msra.mxu0 %v54
    %681 = vmatpush.msra.mxu0 %v50
    %682 = vmatmul.f32.gmra.mxu0 %v645
    %v683 = vpop.f32.mrf.mxu0
    %v684 = vadd.f32 0.0, %v683
    %685 = vdwg.mxu0
    %686 = vmatpush.msra.mxu0 %v111
    %687 = vmatpush.msra.mxu0 %v107
    %688 = vmatpush.msra.mxu0 %v103
    %689 = vmatpush.msra.mxu0 %v99
    %690 = vmatpush.msra.mxu0 %v95
    %691 = vmatpush.msra.mxu0 %v91
    %692 = vmatpush.msra.mxu0 %v87
    %693 = vmatpush.msra.mxu0 %v83
    %694 = vmatpush.msra.mxu0 %v79
    %695 = vmatpush.msra.mxu0 %v75
    %696 = vmatpush.msra.mxu0 %v71
    %697 = vmatpush.msra.mxu0 %v67
    %698 = vmatpush.msra.mxu0 %v63
    %699 = vmatpush.msra.mxu0 %v59
    %700 = vmatpush.msra.mxu0 %v55
    %701 = vmatpush.msra.mxu0 %v51
    %702 = vmatmul.f32.gmra.mxu0 %v645
    %v703 = vpop.f32.mrf.mxu0
    %v704 = vadd.f32 0.0, %v703
    %705 = vdwg.mxu0
    %706 = vmatpush.msra.mxu0 %v112
    %707 = vmatpush.msra.mxu0 %v108
    %708 = vmatpush.msra.mxu0 %v104
    %709 = vmatpush.msra.mxu0 %v100
    %710 = vmatpush.msra.mxu0 %v96
    %711 = vmatpush.msra.mxu0 %v92
    %712 = vmatpush.msra.mxu0 %v88
    %713 = vmatpush.msra.mxu0 %v84
    %714 = vmatpush.msra.mxu0 %v80
    %715 = vmatpush.msra.mxu0 %v76
    %716 = vmatpush.msra.mxu0 %v72
    %717 = vmatpush.msra.mxu0 %v68
    %718 = vmatpush.msra.mxu0 %v64
    %719 = vmatpush.msra.mxu0 %v60
    %720 = vmatpush.msra.mxu0 %v56
    %721 = vmatpush.msra.mxu0 %v52
    %722 = vmatmul.f32.gmra.mxu0 %v645
    %v723 = vpop.f32.mrf.mxu0
    %v724 = vadd.f32 0.0, %v723
    %725 = vdwg.mxu0
    %v726 = vmul.f32 %v664, 0.5
    %v727 = vtanh.pop %v726
    %v728 = vmul.f32 %v727, 0.5
    %v729 = vadd.f32 %v728, 0.5
    %v730 = vmul.f32 %v684, 0.5
    %v731 = vtanh.pop %v730
    %v732 = vmul.f32 %v731, 0.5
    %v733 = vadd.f32 %v732, 0.5
    %v734 = vtanh.pop %v704
    %v735 = vmul.f32 %v724, 0.5
    %v736 = vtanh.pop %v735
    %v737 = vmul.f32 %v736, 0.5
    %v738 = vadd.f32 %v737, 0.5
    %v739 = vmul.f32 %v729, %v624
    %v740 = vmul.f32 %v733, %v734
    %v741 = vadd.f32 %v739, %v740
    %v742 = vtanh.pop %v741
    %v743 = vmul.f32 %v738, %v742
    %v744 = vpack.c.bf16 %v743, %v743
    %s745 = scalar_lea.vmem %s5, 16
    %746 = vst [vmem:[%s745] sm:$0xf] %v744
    %s747 = scalar_lea.vmem %s0, 40
    %v748 = vld [vmem:[%s747] sm:$0xff]
    %749 = vmatpush.bf16.msra.mxu0 %v156
    %750 = vmatpush.bf16.msra.mxu0 %v155
    %751 = vmatpush.bf16.msra.mxu0 %v154
    %752 = vmatpush.bf16.msra.mxu0 %v153
    %753 = vmatpush.bf16.msra.mxu0 %v152
    %754 = vmatpush.bf16.msra.mxu0 %v151
    %755 = vmatpush.bf16.msra.mxu0 %v150
    %756 = vmatpush.bf16.msra.mxu0 %v149
    %757 = vmatmul.bf16.gmra.mxu0 %v744
    %v758 = vpop.f32.mrf.mxu0
    %v759 = vadd.f32 0.0, %v758
    %v760 = vpop.f32.mrf.mxu0
    %761 = vdwg.mxu0
    %v762 = vmul.f32 %v759, %v748
    %763 = vmatpush.msra.mxu0 %v109
    %764 = vmatpush.msra.mxu0 %v105
    %765 = vmatpush.msra.mxu0 %v101
    %766 = vmatpush.msra.mxu0 %v97
    %767 = vmatpush.msra.mxu0 %v93
    %768 = vmatpush.msra.mxu0 %v89
    %769 = vmatpush.msra.mxu0 %v85
    %770 = vmatpush.msra.mxu0 %v81
    %771 = vmatpush.msra.mxu0 %v77
    %772 = vmatpush.msra.mxu0 %v73
    %773 = vmatpush.msra.mxu0 %v69
    %774 = vmatpush.msra.mxu0 %v65
    %775 = vmatpush.msra.mxu0 %v61
    %776 = vmatpush.msra.mxu0 %v57
    %777 = vmatpush.msra.mxu0 %v53
    %778 = vmatpush.msra.mxu0 %v49
    %779 = vmatmul.f32.gmra.mxu0 %v762
    %v780 = vpop.f32.mrf.mxu0
    %v781 = vadd.f32 0.0, %v780
    %782 = vdwg.mxu0
    %783 = vmatpush.msra.mxu0 %v110
    %784 = vmatpush.msra.mxu0 %v106
    %785 = vmatpush.msra.mxu0 %v102
    %786 = vmatpush.msra.mxu0 %v98
    %787 = vmatpush.msra.mxu0 %v94
    %788 = vmatpush.msra.mxu0 %v90
    %789 = vmatpush.msra.mxu0 %v86
    %790 = vmatpush.msra.mxu0 %v82
    %791 = vmatpush.msra.mxu0 %v78
    %792 = vmatpush.msra.mxu0 %v74
    %793 = vmatpush.msra.mxu0 %v70
    %794 = vmatpush.msra.mxu0 %v66
    %795 = vmatpush.msra.mxu0 %v62
    %796 = vmatpush.msra.mxu0 %v58
    %797 = vmatpush.msra.mxu0 %v54
    %798 = vmatpush.msra.mxu0 %v50
    %799 = vmatmul.f32.gmra.mxu0 %v762
    %v800 = vpop.f32.mrf.mxu0
    %v801 = vadd.f32 0.0, %v800
    %802 = vdwg.mxu0
    %803 = vmatpush.msra.mxu0 %v111
    %804 = vmatpush.msra.mxu0 %v107
    %805 = vmatpush.msra.mxu0 %v103
    %806 = vmatpush.msra.mxu0 %v99
    %807 = vmatpush.msra.mxu0 %v95
    %808 = vmatpush.msra.mxu0 %v91
    %809 = vmatpush.msra.mxu0 %v87
    %810 = vmatpush.msra.mxu0 %v83
    %811 = vmatpush.msra.mxu0 %v79
    %812 = vmatpush.msra.mxu0 %v75
    %813 = vmatpush.msra.mxu0 %v71
    %814 = vmatpush.msra.mxu0 %v67
    %815 = vmatpush.msra.mxu0 %v63
    %816 = vmatpush.msra.mxu0 %v59
    %817 = vmatpush.msra.mxu0 %v55
    %818 = vmatpush.msra.mxu0 %v51
    %819 = vmatmul.f32.gmra.mxu0 %v762
    %v820 = vpop.f32.mrf.mxu0
    %v821 = vadd.f32 0.0, %v820
    %822 = vdwg.mxu0
    %823 = vmatpush.msra.mxu0 %v112
    %824 = vmatpush.msra.mxu0 %v108
    %825 = vmatpush.msra.mxu0 %v104
    %826 = vmatpush.msra.mxu0 %v100
    %827 = vmatpush.msra.mxu0 %v96
    %828 = vmatpush.msra.mxu0 %v92
    %829 = vmatpush.msra.mxu0 %v88
    %830 = vmatpush.msra.mxu0 %v84
    %831 = vmatpush.msra.mxu0 %v80
    %832 = vmatpush.msra.mxu0 %v76
    %833 = vmatpush.msra.mxu0 %v72
    %834 = vmatpush.msra.mxu0 %v68
    %835 = vmatpush.msra.mxu0 %v64
    %836 = vmatpush.msra.mxu0 %v60
    %837 = vmatpush.msra.mxu0 %v56
    %838 = vmatpush.msra.mxu0 %v52
    %839 = vmatmul.f32.gmra.mxu0 %v762
    %v840 = vpop.f32.mrf.mxu0
    %v841 = vadd.f32 0.0, %v840
    %842 = vdwg.mxu0
    %v843 = vmul.f32 %v781, 0.5
    %v844 = vtanh.pop %v843
    %v845 = vmul.f32 %v844, 0.5
    %v846 = vadd.f32 %v845, 0.5
    %v847 = vmul.f32 %v801, 0.5
    %v848 = vtanh.pop %v847
    %v849 = vmul.f32 %v848, 0.5
    %v850 = vadd.f32 %v849, 0.5
    %v851 = vtanh.pop %v821
    %v852 = vmul.f32 %v841, 0.5
    %v853 = vtanh.pop %v852
    %v854 = vmul.f32 %v853, 0.5
    %v855 = vadd.f32 %v854, 0.5
    %v856 = vmul.f32 %v846, %v741
    %v857 = vmul.f32 %v850, %v851
    %v858 = vadd.f32 %v856, %v857
    %v859 = vtanh.pop %v858
    %v860 = vmul.f32 %v855, %v859
    %v861 = vpack.c.bf16 %v860, %v860
    %s862 = scalar_lea.vmem %s5, 20
    %863 = vst [vmem:[%s862] sm:$0xf] %v861
    %s864 = scalar_lea.vmem %s0, 48
    %v865 = vld [vmem:[%s864] sm:$0xff]
    %866 = vmatpush.bf16.msra.mxu0 %v156
    %867 = vmatpush.bf16.msra.mxu0 %v155
    %868 = vmatpush.bf16.msra.mxu0 %v154
    %869 = vmatpush.bf16.msra.mxu0 %v153
    %870 = vmatpush.bf16.msra.mxu0 %v152
    %871 = vmatpush.bf16.msra.mxu0 %v151
    %872 = vmatpush.bf16.msra.mxu0 %v150
    %873 = vmatpush.bf16.msra.mxu0 %v149
    %874 = vmatmul.bf16.gmra.mxu0 %v861
    %v875 = vpop.f32.mrf.mxu0
    %v876 = vadd.f32 0.0, %v875
    %v877 = vpop.f32.mrf.mxu0
    %878 = vdwg.mxu0
    %v879 = vmul.f32 %v876, %v865
    %880 = vmatpush.msra.mxu0 %v109
    %881 = vmatpush.msra.mxu0 %v105
    %882 = vmatpush.msra.mxu0 %v101
    %883 = vmatpush.msra.mxu0 %v97
    %884 = vmatpush.msra.mxu0 %v93
    %885 = vmatpush.msra.mxu0 %v89
    %886 = vmatpush.msra.mxu0 %v85
    %887 = vmatpush.msra.mxu0 %v81
    %888 = vmatpush.msra.mxu0 %v77
    %889 = vmatpush.msra.mxu0 %v73
    %890 = vmatpush.msra.mxu0 %v69
    %891 = vmatpush.msra.mxu0 %v65
    %892 = vmatpush.msra.mxu0 %v61
    %893 = vmatpush.msra.mxu0 %v57
    %894 = vmatpush.msra.mxu0 %v53
    %895 = vmatpush.msra.mxu0 %v49
    %896 = vmatmul.f32.gmra.mxu0 %v879
    %v897 = vpop.f32.mrf.mxu0
    %v898 = vadd.f32 0.0, %v897
    %899 = vdwg.mxu0
    %900 = vmatpush.msra.mxu0 %v110
    %901 = vmatpush.msra.mxu0 %v106
    %902 = vmatpush.msra.mxu0 %v102
    %903 = vmatpush.msra.mxu0 %v98
    %904 = vmatpush.msra.mxu0 %v94
    %905 = vmatpush.msra.mxu0 %v90
    %906 = vmatpush.msra.mxu0 %v86
    %907 = vmatpush.msra.mxu0 %v82
    %908 = vmatpush.msra.mxu0 %v78
    %909 = vmatpush.msra.mxu0 %v74
    %910 = vmatpush.msra.mxu0 %v70
    %911 = vmatpush.msra.mxu0 %v66
    %912 = vmatpush.msra.mxu0 %v62
    %913 = vmatpush.msra.mxu0 %v58
    %914 = vmatpush.msra.mxu0 %v54
    %915 = vmatpush.msra.mxu0 %v50
    %916 = vmatmul.f32.gmra.mxu0 %v879
    %v917 = vpop.f32.mrf.mxu0
    %v918 = vadd.f32 0.0, %v917
    %919 = vdwg.mxu0
    %920 = vmatpush.msra.mxu0 %v111
    %921 = vmatpush.msra.mxu0 %v107
    %922 = vmatpush.msra.mxu0 %v103
    %923 = vmatpush.msra.mxu0 %v99
    %924 = vmatpush.msra.mxu0 %v95
    %925 = vmatpush.msra.mxu0 %v91
    %926 = vmatpush.msra.mxu0 %v87
    %927 = vmatpush.msra.mxu0 %v83
    %928 = vmatpush.msra.mxu0 %v79
    %929 = vmatpush.msra.mxu0 %v75
    %930 = vmatpush.msra.mxu0 %v71
    %931 = vmatpush.msra.mxu0 %v67
    %932 = vmatpush.msra.mxu0 %v63
    %933 = vmatpush.msra.mxu0 %v59
    %934 = vmatpush.msra.mxu0 %v55
    %935 = vmatpush.msra.mxu0 %v51
    %936 = vmatmul.f32.gmra.mxu0 %v879
    %v937 = vpop.f32.mrf.mxu0
    %v938 = vadd.f32 0.0, %v937
    %939 = vdwg.mxu0
    %940 = vmatpush.msra.mxu0 %v112
    %941 = vmatpush.msra.mxu0 %v108
    %942 = vmatpush.msra.mxu0 %v104
    %943 = vmatpush.msra.mxu0 %v100
    %944 = vmatpush.msra.mxu0 %v96
    %945 = vmatpush.msra.mxu0 %v92
    %946 = vmatpush.msra.mxu0 %v88
    %947 = vmatpush.msra.mxu0 %v84
    %948 = vmatpush.msra.mxu0 %v80
    %949 = vmatpush.msra.mxu0 %v76
    %950 = vmatpush.msra.mxu0 %v72
    %951 = vmatpush.msra.mxu0 %v68
    %952 = vmatpush.msra.mxu0 %v64
    %953 = vmatpush.msra.mxu0 %v60
    %954 = vmatpush.msra.mxu0 %v56
    %955 = vmatpush.msra.mxu0 %v52
    %956 = vmatmul.f32.gmra.mxu0 %v879
    %v957 = vpop.f32.mrf.mxu0
    %v958 = vadd.f32 0.0, %v957
    %959 = vdwg.mxu0
    %v960 = vmul.f32 %v898, 0.5
    %v961 = vtanh.pop %v960
    %v962 = vmul.f32 %v961, 0.5
    %v963 = vadd.f32 %v962, 0.5
    %v964 = vmul.f32 %v918, 0.5
    %v965 = vtanh.pop %v964
    %v966 = vmul.f32 %v965, 0.5
    %v967 = vadd.f32 %v966, 0.5
    %v968 = vtanh.pop %v938
    %v969 = vmul.f32 %v958, 0.5
    %v970 = vtanh.pop %v969
    %v971 = vmul.f32 %v970, 0.5
    %v972 = vadd.f32 %v971, 0.5
    %v973 = vmul.f32 %v963, %v858
    %v974 = vmul.f32 %v967, %v968
    %v975 = vadd.f32 %v973, %v974
    %v976 = vtanh.pop %v975
    %v977 = vmul.f32 %v972, %v976
    %v978 = vpack.c.bf16 %v977, %v977
    %s979 = scalar_lea.vmem %s5, 24
    %980 = vst [vmem:[%s979] sm:$0xf] %v978
    %s981 = scalar_lea.vmem %s0, 56
    %v982 = vld [vmem:[%s981] sm:$0xff]
    %983 = vmatpush.bf16.msra.mxu0 %v156
    %984 = vmatpush.bf16.msra.mxu0 %v155
    %985 = vmatpush.bf16.msra.mxu0 %v154
    %986 = vmatpush.bf16.msra.mxu0 %v153
    %987 = vmatpush.bf16.msra.mxu0 %v152
    %988 = vmatpush.bf16.msra.mxu0 %v151
    %989 = vmatpush.bf16.msra.mxu0 %v150
    %990 = vmatpush.bf16.msra.mxu0 %v149
    %991 = vmatmul.bf16.gmra.mxu0 %v978
    %v992 = vpop.f32.mrf.mxu0
    %v993 = vadd.f32 0.0, %v992
    %v994 = vpop.f32.mrf.mxu0
    %995 = vdwg.mxu0
    %v996 = vmul.f32 %v993, %v982
    %997 = vmatpush.msra.mxu0 %v109
    %998 = vmatpush.msra.mxu0 %v105
    %999 = vmatpush.msra.mxu0 %v101
    %1000 = vmatpush.msra.mxu0 %v97
    %1001 = vmatpush.msra.mxu0 %v93
    %1002 = vmatpush.msra.mxu0 %v89
    %1003 = vmatpush.msra.mxu0 %v85
    %1004 = vmatpush.msra.mxu0 %v81
    %1005 = vmatpush.msra.mxu0 %v77
    %1006 = vmatpush.msra.mxu0 %v73
    %1007 = vmatpush.msra.mxu0 %v69
    %1008 = vmatpush.msra.mxu0 %v65
    %1009 = vmatpush.msra.mxu0 %v61
    %1010 = vmatpush.msra.mxu0 %v57
    %1011 = vmatpush.msra.mxu0 %v53
    %1012 = vmatpush.msra.mxu0 %v49
    %1013 = vmatmul.f32.gmra.mxu0 %v996
    %v1014 = vpop.f32.mrf.mxu0
    %v1015 = vadd.f32 0.0, %v1014
    %1016 = vdwg.mxu0
    %1017 = vmatpush.msra.mxu0 %v110
    %1018 = vmatpush.msra.mxu0 %v106
    %1019 = vmatpush.msra.mxu0 %v102
    %1020 = vmatpush.msra.mxu0 %v98
    %1021 = vmatpush.msra.mxu0 %v94
    %1022 = vmatpush.msra.mxu0 %v90
    %1023 = vmatpush.msra.mxu0 %v86
    %1024 = vmatpush.msra.mxu0 %v82
    %1025 = vmatpush.msra.mxu0 %v78
    %1026 = vmatpush.msra.mxu0 %v74
    %1027 = vmatpush.msra.mxu0 %v70
    %1028 = vmatpush.msra.mxu0 %v66
    %1029 = vmatpush.msra.mxu0 %v62
    %1030 = vmatpush.msra.mxu0 %v58
    %1031 = vmatpush.msra.mxu0 %v54
    %1032 = vmatpush.msra.mxu0 %v50
    %1033 = vmatmul.f32.gmra.mxu0 %v996
    %v1034 = vpop.f32.mrf.mxu0
    %v1035 = vadd.f32 0.0, %v1034
    %1036 = vdwg.mxu0
    %1037 = vmatpush.msra.mxu0 %v111
    %1038 = vmatpush.msra.mxu0 %v107
    %1039 = vmatpush.msra.mxu0 %v103
    %1040 = vmatpush.msra.mxu0 %v99
    %1041 = vmatpush.msra.mxu0 %v95
    %1042 = vmatpush.msra.mxu0 %v91
    %1043 = vmatpush.msra.mxu0 %v87
    %1044 = vmatpush.msra.mxu0 %v83
    %1045 = vmatpush.msra.mxu0 %v79
    %1046 = vmatpush.msra.mxu0 %v75
    %1047 = vmatpush.msra.mxu0 %v71
    %1048 = vmatpush.msra.mxu0 %v67
    %1049 = vmatpush.msra.mxu0 %v63
    %1050 = vmatpush.msra.mxu0 %v59
    %1051 = vmatpush.msra.mxu0 %v55
    %1052 = vmatpush.msra.mxu0 %v51
    %1053 = vmatmul.f32.gmra.mxu0 %v996
    %v1054 = vpop.f32.mrf.mxu0
    %v1055 = vadd.f32 0.0, %v1054
    %1056 = vdwg.mxu0
    %1057 = vmatpush.msra.mxu0 %v112
    %1058 = vmatpush.msra.mxu0 %v108
    %1059 = vmatpush.msra.mxu0 %v104
    %1060 = vmatpush.msra.mxu0 %v100
    %1061 = vmatpush.msra.mxu0 %v96
    %1062 = vmatpush.msra.mxu0 %v92
    %1063 = vmatpush.msra.mxu0 %v88
    %1064 = vmatpush.msra.mxu0 %v84
    %1065 = vmatpush.msra.mxu0 %v80
    %1066 = vmatpush.msra.mxu0 %v76
    %1067 = vmatpush.msra.mxu0 %v72
    %1068 = vmatpush.msra.mxu0 %v68
    %1069 = vmatpush.msra.mxu0 %v64
    %1070 = vmatpush.msra.mxu0 %v60
    %1071 = vmatpush.msra.mxu0 %v56
    %1072 = vmatpush.msra.mxu0 %v52
    %1073 = vmatmul.f32.gmra.mxu0 %v996
    %v1074 = vpop.f32.mrf.mxu0
    %v1075 = vadd.f32 0.0, %v1074
    %1076 = vdwg.mxu0
    %v1077 = vmul.f32 %v1015, 0.5
    %v1078 = vtanh.pop %v1077
    %v1079 = vmul.f32 %v1078, 0.5
    %v1080 = vadd.f32 %v1079, 0.5
    %v1081 = vmul.f32 %v1035, 0.5
    %v1082 = vtanh.pop %v1081
    %v1083 = vmul.f32 %v1082, 0.5
    %v1084 = vadd.f32 %v1083, 0.5
    %v1085 = vtanh.pop %v1055
    %v1086 = vmul.f32 %v1075, 0.5
    %v1087 = vtanh.pop %v1086
    %v1088 = vmul.f32 %v1087, 0.5
    %v1089 = vadd.f32 %v1088, 0.5
    %v1090 = vmul.f32 %v1080, %v975
    %v1091 = vmul.f32 %v1084, %v1085
    %v1092 = vadd.f32 %v1090, %v1091
    %v1093 = vtanh.pop %v1092
    %v1094 = vmul.f32 %v1089, %v1093
    %v1095 = vpack.c.bf16 %v1094, %v1094
    %s1096 = scalar_lea.vmem %s5, 28
    %1097 = vst [vmem:[%s1096] sm:$0xf] %v1095
    %1098 = vst [vmem:[#allocation2] sm:$0xff] %v1094
    %1099 = vst [vmem:[#allocation4] sm:$0xff] %v1092
    // Predicated region
    $region26: #{cp_lstm_forward.4} parent=1 // pred_check
      _
    $region27: #{cp_lstm_forward.4} parent=1 // pred_check_branch
      %1101 = sbr.rel (0) target = $region29
    $region28: #{cp_lstm_forward.4} parent=1 // pred_region
      _
    $region29: #{cp_lstm_forward.4} parent=1 // pred_fallthru
      _
    // Predicated region
    $region30: #{cp_lstm_forward.4} parent=1 // pred_check
      _
    $region31: #{cp_lstm_forward.4} parent=1 // pred_check_branch
      %1103 = sbr.rel (0) target = $region33
    $region32: #{cp_lstm_forward.4} parent=1 // pred_region
      %1105 = vsyncadd [#allocation3], 0
      %s1107 = sshll.u32 [#allocation2], 4
      %s1108 = int_to_ptr.vmem [resolvable:$true] %s1107
      %s1109 = sshll.u32 %s6, 4
      %s1110 = int_to_ptr.hbm [resolvable:$true] %s1109
      %1112 = dma.vmem_to_hbm [thread:$0]  %s1108, 128, %s1110, [#allocation3]
    $region33: #{cp_lstm_forward.4} parent=1 // pred_fallthru
      _
    // Predicated region
    $region34: #{cp_lstm_forward.4} parent=1 // pred_check
      _
    $region35: #{cp_lstm_forward.4} parent=1 // pred_check_branch
      %1114 = sbr.rel (0) target = $region37
    $region36: #{cp_lstm_forward.4} parent=1 // pred_region
      %1116 = vsyncadd [#allocation5], 0
      %s1118 = sshll.u32 [#allocation4], 4
      %s1119 = int_to_ptr.vmem [resolvable:$true] %s1118
      %s1120 = sshll.u32 %s7, 4
      %s1121 = int_to_ptr.hbm [resolvable:$true] %s1120
      %1123 = dma.vmem_to_hbm [thread:$0]  %s1119, 128, %s1121, [#allocation5]
    $region37: #{cp_lstm_forward.4} parent=1 // pred_fallthru
      _
    // Predicated region
    $region38: #{cp_lstm_forward.4} parent=1 // pred_check
      _
    $region39: #{cp_lstm_forward.4} parent=1 // pred_check_branch
      %1125 = sbr.rel (0) target = $region41
    $region40: #{cp_lstm_forward.4} parent=1 // pred_region
      _
    $region41: #{cp_lstm_forward.4} parent=1 // pred_fallthru
      _
    // Predicated region
    $region42: #{cp_lstm_forward.4} parent=1 // pred_check
      _
    $region43: #{cp_lstm_forward.4} parent=1 // pred_check_branch
      %1127 = sbr.rel (0) target = $region45
    $region44: #{cp_lstm_forward.4} parent=1 // pred_region
      %1129 = dma.done [#allocation3], 128
    $region45: #{cp_lstm_forward.4} parent=1 // pred_fallthru
      _
    // Predicated region
    $region46: #{cp_lstm_forward.4} parent=1 // pred_check
      _
    $region47: #{cp_lstm_forward.4} parent=1 // pred_check_branch
      %1131 = sbr.rel (0) target = $region49
    $region48: #{cp_lstm_forward.4} parent=1 // pred_region
      %1133 = dma.done [#allocation5], 128
    $region49: #{cp_lstm_forward.4} parent=1 // pred_fallthru
      _
    %1134 = vsyncpa [#allocation3], 1
    %1135 = vsyncpa [#allocation5], 1

</llo_original>
